<compile_context>
chip_gen: v7x
topology: tpu7x:2x2x1
jax: 0.10.0
libtpu: 0.0.40
codegen_flags: <defaults>
</compile_context>

<pallas_src>
import functools
import math

import jax
import jax.numpy as jnp
from jax.experimental import pallas as pl
from jax.experimental.pallas import tpu as pltpu

LN_EPS = 1e-5


# ----------------------------------------------------------------------------
# Shared math helpers (traced both inside the kernel and in the JAX reference,
# so kernel and reference round identically).
# ----------------------------------------------------------------------------
def _layer_norm(x, gamma, beta):
    mu = jnp.mean(x, axis=-1, keepdims=True)
    var = jnp.mean((x - mu) ** 2, axis=-1, keepdims=True)
    return (x - mu) * jax.lax.rsqrt(var + LN_EPS) * gamma + beta


def _topk_mask(logits, top_k):
    # Iterative arg-max mask (top_k is small & static). Matches torch.topk up to tie-breaking.
    work = logits
    mask = jnp.zeros_like(logits, dtype=jnp.bool_)
    for _ in range(top_k):
        cur = jnp.max(work, axis=-1, keepdims=True)
        sel = work == cur
        mask = jnp.logical_or(mask, sel)
        work = jnp.where(sel, -jnp.inf, work)
    return mask


def _mm(a, b):
    # bf16-in / f32-accumulate matmul (same rounding policy as the in-kernel MXU dots).
    return jnp.dot(a.astype(jnp.bfloat16), b.astype(jnp.bfloat16),
                   preferred_element_type=jnp.float32)


# ----------------------------------------------------------------------------
# Fused kernel.  Grid = (batch_tiles, num_experts); expert axis is the (innermost) reduction.
# ----------------------------------------------------------------------------
def _fused_block_kernel(x_ref, g1_ref, b1_ref, wqkv_ref, bqkv_ref, woh_ref, bo_ref,
                        g2_ref, b2_ref, wg_ref, bg_ref,
                        w1_ref, be1_ref, w2_ref, be2_ref,
                        out_ref,
                        acc_s, xn2_s, gate_s,
                        *, num_heads, top_k):
    e_idx = pl.program_id(1)

    # ---- first expert step of this batch tile: LN1 + attention + LN2 + gating ----
    @pl.when(e_idx == 0)
    def _prologue():
        Bt, S, D = x_ref.shape
        H = num_heads
        hd = D // H
        scale = 1.0 / math.sqrt(hd)

        x = x_ref[...].reshape(Bt * S, D)                       # (N, D) f32 tokens

        # LayerNorm 1 (f32)
        xn = _layer_norm(x, g1_ref[...], b1_ref[...])

        # Fused QKV projection: one wide MXU GEMM, bf16 in / f32 accumulate.
        qkv = jnp.dot(xn.astype(jnp.bfloat16), wqkv_ref[...],
                      preferred_element_type=jnp.float32) + bqkv_ref[...]

        # Self-attention, per-sequence and per-head (static unroll, lane-aligned slices).
        y_rows = []
        for bi in range(Bt):
            row = qkv[bi * S:(bi + 1) * S]
            q = (row[:, :D] * scale).astype(jnp.bfloat16)       # pre-scale q (S*D muls, not S*S)
            k = row[:, D:2 * D].astype(jnp.bfloat16)
            v = row[:, 2 * D:].astype(jnp.bfloat16)
            y_b = None
            for hh in range(H):
                qh = q[:, hh * hd:(hh + 1) * hd]
                kh = k[:, hh * hd:(hh + 1) * hd]
                vh = v[:, hh * hd:(hh + 1) * hd]
                # scores: contract on the shared head dim (no materialized transpose of k).
                sc = jax.lax.dot_general(qh, kh, (((1,), (1,)), ((), ())),
                                         preferred_element_type=jnp.float32)
                sc = sc - jnp.max(sc, axis=-1, keepdims=True)
                p = jnp.exp(sc)
                # Exact divide keeps routing bit-stable vs. the f32 reference; use
                # pl.reciprocal(..., approx=True) here in production.
                p = p / jnp.sum(p, axis=-1, keepdims=True)
                ctx = jnp.dot(p.astype(jnp.bfloat16), vh,
                              preferred_element_type=jnp.float32)
                # Per-head partial output projection (hd, D); summing over heads == full W_o,
                # avoiding a lane-axis concatenate of hd-wide head slices.
                yh = jnp.dot(ctx.astype(jnp.bfloat16), woh_ref[hh],
                             preferred_element_type=jnp.float32)
                y_b = yh if y_b is None else y_b + yh
            y_rows.append(y_b)
        y = y_rows[0] if Bt == 1 else jnp.concatenate(y_rows, axis=0)

        x1 = y + bo_ref[...] + x                                # attention residual, (N, D) f32

        # LayerNorm 2 + gating (statistics in f32, gate GEMM bf16-in / f32-acc).
        xn2 = _layer_norm(x1, g2_ref[...], b2_ref[...])
        logits = jnp.dot(xn2.astype(jnp.bfloat16), wg_ref[...],
                         preferred_element_type=jnp.float32) + bg_ref[...]
        lmax = jnp.max(logits, axis=-1, keepdims=True)
        pe = jnp.exp(logits - lmax)
        probs = pe / jnp.sum(pe, axis=-1, keepdims=True)
        mask = _topk_mask(logits, top_k)
        pm = jnp.where(mask, probs, 0.0)
        # approx reciprocal: post-selection renormalization -> cannot flip routing; EUP slot.
        gate = pm * pl.reciprocal(jnp.sum(pm, axis=-1, keepdims=True), approx=True)

        acc_s[...] = x1                                         # residual pre-loaded into accumulator
        xn2_s[...] = xn2.astype(jnp.bfloat16)
        gate_s[...] = gate

    # ---- every expert step: expert FFN on the streamed (1, D, F)/(1, F, D) weight tiles ----
    xh = xn2_s[...]                                             # (N, D) bf16
    h = jnp.dot(xh, w1_ref[0], preferred_element_type=jnp.float32) + be1_ref[0]
    h = jnp.maximum(h, 0.0)                                     # ReLU
    oe = jnp.dot(h.astype(jnp.bfloat16), w2_ref[0],
                 preferred_element_type=jnp.float32) + be2_ref[0]

    n_exp = gate_s.shape[-1]
    onehot = (jax.lax.broadcasted_iota(jnp.int32, (1, n_exp), 1) == e_idx).astype(jnp.float32)
    gw = jnp.sum(gate_s[...] * onehot, axis=-1, keepdims=True)  # (N, 1) gate weight of expert e
    acc_s[...] = acc_s[...] + gw * oe

    # ---- last expert step: write the finished lane-dense (Bt, S, D) output block ----
    @pl.when(e_idx == pl.num_programs(1) - 1)
    def _epilogue():
        out_ref[...] = acc_s[...].reshape(out_ref.shape)


# ----------------------------------------------------------------------------
# Wrapper
# ----------------------------------------------------------------------------
def moe_gpt_block(x, params, *, num_heads, top_k, block_b=1):
    B, S, D = x.shape
    E, _, F = params["w1_t"].shape
    H = num_heads
    hd = D // H
    assert D % H == 0 and B % block_b == 0
    nb = B // block_b
    N = block_b * S

    bf16 = jnp.bfloat16
    # MXU operands in bf16 (f32 accumulation happens in-kernel); LN params / biases stay f32.
    wqkv = params["wqkv_t"].astype(bf16)                        # (D, 3D)
    wo_h = params["wo_t"].reshape(H, hd, D).astype(bf16)        # (H, hd, D) per-head out-proj
    wg = params["wg_t"].astype(bf16)                            # (D, E)
    w1 = params["w1_t"].astype(bf16)                            # (E, D, F)
    w2 = params["w2_t"].astype(bf16)                            # (E, F, D)

    const2 = lambda b, e: (0, 0)
    const3 = lambda b, e: (0, 0, 0)
    expert3 = lambda b, e: (e, 0, 0)
    xmap = lambda b, e: (b, 0, 0)

    kernel = functools.partial(_fused_block_kernel, num_heads=H, top_k=top_k)
    fn = pl.pallas_call(
        kernel,
        out_shape=jax.ShapeDtypeStruct((B, S, D), jnp.float32),
        grid_spec=pltpu.PrefetchScalarGridSpec(
            num_scalar_prefetch=0,
            grid=(nb, E),                                       # expert (reduction) axis last
            in_specs=[
                pl.BlockSpec((block_b, S, D), xmap),            # x
                pl.BlockSpec((1, D), const2),                   # ln1 gamma
                pl.BlockSpec((1, D), const2),                   # ln1 beta
                pl.BlockSpec((D, 3 * D), const2),               # W_qkv^T (bf16)
                pl.BlockSpec((1, 3 * D), const2),               # b_qkv
                pl.BlockSpec((H, hd, D), const3),               # W_o^T split per head (bf16)
                pl.BlockSpec((1, D), const2),                   # b_o
                pl.BlockSpec((1, D), const2),                   # ln2 gamma
                pl.BlockSpec((1, D), const2),                   # ln2 beta
                pl.BlockSpec((D, E), const2),                   # gate weight (bf16)
                pl.BlockSpec((1, E), const2),                   # gate bias
                pl.BlockSpec((1, D, F), expert3),               # expert W1^T, streamed per expert
                pl.BlockSpec((1, 1, F), expert3),               # expert b1
                pl.BlockSpec((1, F, D), expert3),               # expert W2^T, streamed per expert
                pl.BlockSpec((1, 1, D), expert3),               # expert b2
            ],
            out_specs=pl.BlockSpec((block_b, S, D), xmap),
            scratch_shapes=[
                pltpu.VMEM((N, D), jnp.float32),                # acc: residual + weighted expert sum
                pltpu.VMEM((N, D), jnp.bfloat16),               # LN2 output (expert GEMM input)
                pltpu.VMEM((N, E), jnp.float32),                # gate weights
            ],
        ),
        compiler_params=pltpu.CompilerParams(
            dimension_semantics=("parallel", "arbitrary"),
            vmem_limit_bytes=32 * 1024 * 1024,                  # safe on v5e/v6e/v7x
        ),
    )
    return fn(x, params["ln1_g"], params["ln1_b"], wqkv, params["bqkv"], wo_h, params["bo"],
              params["ln2_g"], params["ln2_b"], wg, params["bg"],
              w1, params["b1"], w2, params["b2"])


# ----------------------------------------------------------------------------
# Pure-JAX reference (same math and same bf16-in / f32-acc matmul policy) for validation.
# ----------------------------------------------------------------------------
def reference(x, p, *, num_heads, num_experts, top_k):
    B, S, D = x.shape
    H = num_heads
    hd = D // H
    scale = 1.0 / math.sqrt(hd)

    xn = _layer_norm(x, p["ln1_g"], p["ln1_b"])
    qkv = _mm(xn.reshape(B * S, D), p["wqkv_t"]).reshape(B, S, 3 * D) + p["bqkv"]
    q, k, v = qkv[..., :D], qkv[..., D:2 * D], qkv[..., 2 * D:]

    def split(t):  # (B,S,D) -> (B,H,S,hd)
        return t.reshape(B, S, H, hd).transpose(0, 2, 1, 3).astype(jnp.bfloat16)

    qh, kh, vh = split(q * scale), split(k), split(v)
    sc = jnp.einsum("bhqd,bhkd->bhqk", qh, kh, preferred_element_type=jnp.float32)
    pr = jax.nn.softmax(sc, axis=-1)
    ctx = jnp.einsum("bhqk,bhkd->bhqd", pr.astype(jnp.bfloat16), vh,
                     preferred_element_type=jnp.float32)
    ctx = ctx.transpose(0, 2, 1, 3).reshape(B, S, D)
    x1 = _mm(ctx.reshape(B * S, D), p["wo_t"]).reshape(B, S, D) + p["bo"] + x

    xn2 = _layer_norm(x1, p["ln2_g"], p["ln2_b"])
    logits = _mm(xn2.reshape(B * S, D), p["wg_t"]).reshape(B, S, -1) + p["bg"]
    probs = jax.nn.softmax(logits, axis=-1)
    mask = _topk_mask(logits, top_k)
    pm = jnp.where(mask, probs, 0.0)
    gate = pm / jnp.sum(pm, axis=-1, keepdims=True)

    acc = x1
    for ex in range(num_experts):
        h = jnp.maximum(_mm(xn2.reshape(B * S, D), p["w1_t"][ex]).reshape(B, S, -1) + p["b1"][ex], 0.0)
        oe = _mm(h.reshape(B * S, -1), p["w2_t"][ex]).reshape(B, S, D) + p["b2"][ex]
        acc = acc + gate[..., ex:ex + 1] * oe
    return acc


if __name__ == "__main__":
    B, S, D = 2, 8, 32
    H, E, K, F = 4, 4, 2, 64

    key = jax.random.PRNGKey(0)
    ks = jax.random.split(key, 10)
    init = lambda k, shape, scale: (scale * jax.random.normal(k, shape)).astype(jnp.float32)

    params = {
        "ln1_g": jnp.ones((1, D), jnp.float32),
        "ln1_b": jnp.zeros((1, D), jnp.float32),
        "wqkv_t": init(ks[0], (D, 3 * D), 1.0 / math.sqrt(D)),
        "bqkv": jnp.zeros((1, 3 * D), jnp.float32),
        "wo_t": init(ks[1], (D, D), 1.0 / math.sqrt(D)),
        "bo": jnp.zeros((1, D), jnp.float32),
        "ln2_g": jnp.ones((1, D), jnp.float32),
        "ln2_b": jnp.zeros((1, D), jnp.float32),
        "wg_t": init(ks[2], (D, E), 1.0 / math.sqrt(D)),
        "bg": jnp.zeros((1, E), jnp.float32),
        "w1_t": init(ks[3], (E, D, F), 1.0 / math.sqrt(D)),
        "b1": init(ks[4], (E, 1, F), 0.02),
        "w2_t": init(ks[5], (E, F, D), 1.0 / math.sqrt(F)),
        "b2": init(ks[6], (E, 1, D), 0.02),
    }

    x = jax.random.normal(ks[7], (B, S, D), jnp.float32)

    # block_b=1 keeps the parallel batch axis at extent 2 (both TCs busy on v7x at this toy size);
    # for real shapes raise block_b so each grid step carries >=128 token rows.
    out = moe_gpt_block(x, params, num_heads=H, top_k=K, block_b=1)
    out = jax.block_until_ready(out)

    ref = reference(x, params, num_heads=H, num_experts=E, top_k=K)
    assert out.shape == (B, S, D)
    max_err = float(jnp.max(jnp.abs(out - ref)))
    assert jnp.allclose(out, ref, atol=2e-2, rtol=2e-2), f"mismatch vs reference (max abs err {max_err})"

    print("KERNEL_OK")
</pallas_src>

<mosaic_0001>
module attributes {stable_mosaic.version = 11 : i64} {
  func.func @_fused_block_kernel(%arg0: i32, %arg1: i32, %arg2: memref<1x8x32xf32, #tpu.memory_space<vmem>>, %arg3: memref<1x32xf32, #tpu.memory_space<vmem>>, %arg4: memref<1x32xf32, #tpu.memory_space<vmem>>, %arg5: memref<32x96xbf16, #tpu.memory_space<vmem>>, %arg6: memref<1x96xf32, #tpu.memory_space<vmem>>, %arg7: memref<4x8x32xbf16, #tpu.memory_space<vmem>>, %arg8: memref<1x32xf32, #tpu.memory_space<vmem>>, %arg9: memref<1x32xf32, #tpu.memory_space<vmem>>, %arg10: memref<1x32xf32, #tpu.memory_space<vmem>>, %arg11: memref<32x4xbf16, #tpu.memory_space<vmem>>, %arg12: memref<1x4xf32, #tpu.memory_space<vmem>>, %arg13: memref<1x32x64xbf16, #tpu.memory_space<vmem>>, %arg14: memref<1x1x64xf32, #tpu.memory_space<vmem>>, %arg15: memref<1x64x32xbf16, #tpu.memory_space<vmem>>, %arg16: memref<1x1x32xf32, #tpu.memory_space<vmem>>, %arg17: memref<1x8x32xf32, #tpu.memory_space<vmem>>, %arg18: memref<8x32xf32, #tpu.memory_space<vmem>>, %arg19: memref<8x32xbf16, #tpu.memory_space<vmem>>, %arg20: memref<8x4xf32, #tpu.memory_space<vmem>>) attributes {dimension_semantics = [#tpu.dimension_semantics<parallel>, #tpu.dimension_semantics<arbitrary>], iteration_bounds = array<i64: 2, 4>, scalar_prefetch = 0 : i64, scratch_operands = 3 : i64, tpu.core_type = #tpu.core_type<tc>, window_params = [{transform_indices = @transform_0, window_bounds = array<i64: 1, 8, 32>}, {pipeline_mode = #tpu.pipeline_mode<synchronous>, transform_indices = @transform_1, window_bounds = array<i64: 1, 32>}, {pipeline_mode = #tpu.pipeline_mode<synchronous>, transform_indices = @transform_2, window_bounds = array<i64: 1, 32>}, {pipeline_mode = #tpu.pipeline_mode<synchronous>, transform_indices = @transform_3, window_bounds = array<i64: 32, 96>}, {pipeline_mode = #tpu.pipeline_mode<synchronous>, transform_indices = @transform_4, window_bounds = array<i64: 1, 96>}, {pipeline_mode = #tpu.pipeline_mode<synchronous>, transform_indices = @transform_5, window_bounds = array<i64: 4, 8, 32>}, {pipeline_mode = #tpu.pipeline_mode<synchronous>, transform_indices = @transform_6, window_bounds = array<i64: 1, 32>}, {pipeline_mode = #tpu.pipeline_mode<synchronous>, transform_indices = @transform_7, window_bounds = array<i64: 1, 32>}, {pipeline_mode = #tpu.pipeline_mode<synchronous>, transform_indices = @transform_8, window_bounds = array<i64: 1, 32>}, {pipeline_mode = #tpu.pipeline_mode<synchronous>, transform_indices = @transform_9, window_bounds = array<i64: 32, 4>}, {pipeline_mode = #tpu.pipeline_mode<synchronous>, transform_indices = @transform_10, window_bounds = array<i64: 1, 4>}, {transform_indices = @transform_11, window_bounds = array<i64: 1, 32, 64>}, {transform_indices = @transform_12, window_bounds = array<i64: 1, 1, 64>}, {transform_indices = @transform_13, window_bounds = array<i64: 1, 64, 32>}, {transform_indices = @transform_14, window_bounds = array<i64: 1, 1, 32>}, {transform_indices = @transform_15, window_bounds = array<i64: 1, 8, 32>}]} {
    %c0_i32 = arith.constant 0 : i32
    %0 = arith.cmpi eq, %arg1, %c0_i32 : i32
    %1 = arith.extui %0 : i1 to i32
    %c0_i32_0 = arith.constant 0 : i32
    %2 = arith.cmpi ne, %1, %c0_i32_0 : i32
    scf.if %2 {
      %c0_24 = arith.constant 0 : index
      %c0_25 = arith.constant 0 : index
      %c0_26 = arith.constant 0 : index
      %39 = vector.load %arg2[%c0_24, %c0_25, %c0_26] : memref<1x8x32xf32, #tpu.memory_space<vmem>>, vector<1x8x32xf32>
      %40 = vector.shape_cast %39 : vector<1x8x32xf32> to vector<8x32xf32>
      %c0_27 = arith.constant 0 : index
      %c0_28 = arith.constant 0 : index
      %41 = vector.load %arg3[%c0_27, %c0_28] : memref<1x32xf32, #tpu.memory_space<vmem>>, vector<1x32xf32>
      %c0_29 = arith.constant 0 : index
      %c0_30 = arith.constant 0 : index
      %42 = vector.load %arg4[%c0_29, %c0_30] : memref<1x32xf32, #tpu.memory_space<vmem>>, vector<1x32xf32>
      %cst_31 = arith.constant dense<0.000000e+00> : vector<8xf32>
      %43 = vector.multi_reduction <add>, %40, %cst_31 [1] : vector<8x32xf32> to vector<8xf32>
      %44 = vector.shape_cast %43 : vector<8xf32> to vector<8x1xf32>
      %cst_32 = arith.constant 3.200000e+01 : f32
      %45 = vector.broadcast %cst_32 : f32 to vector<8x1xf32>
      %46 = arith.divf %44, %45 : vector<8x1xf32>
      %47 = vector.broadcast %46 : vector<8x1xf32> to vector<8x32xf32>
      %48 = arith.subf %40, %47 : vector<8x32xf32>
      %49 = arith.mulf %48, %48 : vector<8x32xf32>
      %cst_33 = arith.constant dense<0.000000e+00> : vector<8xf32>
      %50 = vector.multi_reduction <add>, %49, %cst_33 [1] : vector<8x32xf32> to vector<8xf32>
      %51 = vector.shape_cast %50 : vector<8xf32> to vector<8x1xf32>
      %cst_34 = arith.constant 3.200000e+01 : f32
      %52 = vector.broadcast %cst_34 : f32 to vector<8x1xf32>
      %53 = arith.divf %51, %52 : vector<8x1xf32>
      %54 = vector.broadcast %46 : vector<8x1xf32> to vector<8x32xf32>
      %55 = arith.subf %40, %54 : vector<8x32xf32>
      %cst_35 = arith.constant 9.99999974E-6 : f32
      %56 = vector.broadcast %cst_35 : f32 to vector<8x1xf32>
      %57 = arith.addf %53, %56 : vector<8x1xf32>
      %58 = math.rsqrt %57 : vector<8x1xf32>
      %59 = vector.broadcast %58 : vector<8x1xf32> to vector<8x32xf32>
      %60 = arith.mulf %55, %59 : vector<8x32xf32>
      %61 = vector.broadcast %41 : vector<1x32xf32> to vector<8x32xf32>
      %62 = arith.mulf %60, %61 : vector<8x32xf32>
      %63 = vector.broadcast %42 : vector<1x32xf32> to vector<8x32xf32>
      %64 = arith.addf %62, %63 : vector<8x32xf32>
      %65 = arith.truncf %64 : vector<8x32xf32> to vector<8x32xbf16>
      %c0_36 = arith.constant 0 : index
      %c0_37 = arith.constant 0 : index
      %66 = vector.load %arg5[%c0_36, %c0_37] : memref<32x96xbf16, #tpu.memory_space<vmem>>, vector<32x96xbf16>
      %cst_38 = arith.constant dense<0.000000e+00> : vector<8x96xf32>
      %67 = tpu.matmul %65, %66, %cst_38 {dimension_numbers = #tpu.dot_dimension_numbers<[1], [0], [0], [1], [0, 0, 1, 1], [], []>} : vector<8x32xbf16>, vector<32x96xbf16>, vector<8x96xf32> -> vector<8x96xf32>
      %c0_39 = arith.constant 0 : index
      %c0_40 = arith.constant 0 : index
      %68 = vector.load %arg6[%c0_39, %c0_40] : memref<1x96xf32, #tpu.memory_space<vmem>>, vector<1x96xf32>
      %69 = vector.broadcast %68 : vector<1x96xf32> to vector<8x96xf32>
      %70 = arith.addf %67, %69 : vector<8x96xf32>
      %71 = vector.extract_strided_slice %70 {offsets = [0, 0], sizes = [8, 32], strides = [1, 1]} : vector<8x96xf32> to vector<8x32xf32>
      %cst_41 = arith.constant 0.353553385 : f32
      %72 = vector.broadcast %cst_41 : f32 to vector<8x32xf32>
      %73 = arith.mulf %71, %72 : vector<8x32xf32>
      %74 = arith.truncf %73 : vector<8x32xf32> to vector<8x32xbf16>
      %75 = vector.extract_strided_slice %70 {offsets = [0, 32], sizes = [8, 32], strides = [1, 1]} : vector<8x96xf32> to vector<8x32xf32>
      %76 = arith.truncf %75 : vector<8x32xf32> to vector<8x32xbf16>
      %77 = vector.extract_strided_slice %70 {offsets = [0, 64], sizes = [8, 32], strides = [1, 1]} : vector<8x96xf32> to vector<8x32xf32>
      %78 = arith.truncf %77 : vector<8x32xf32> to vector<8x32xbf16>
      %79 = vector.extract_strided_slice %74 {offsets = [0, 0], sizes = [8, 8], strides = [1, 1]} : vector<8x32xbf16> to vector<8x8xbf16>
      %80 = vector.extract_strided_slice %76 {offsets = [0, 0], sizes = [8, 8], strides = [1, 1]} : vector<8x32xbf16> to vector<8x8xbf16>
      %81 = vector.extract_strided_slice %78 {offsets = [0, 0], sizes = [8, 8], strides = [1, 1]} : vector<8x32xbf16> to vector<8x8xbf16>
      %cst_42 = arith.constant dense<0.000000e+00> : vector<8x8xf32>
      %82 = tpu.matmul %79, %80, %cst_42 {dimension_numbers = #tpu.dot_dimension_numbers<[1], [1], [0], [0], [0, 0, 1, 0], [], []>} : vector<8x8xbf16>, vector<8x8xbf16>, vector<8x8xf32> -> vector<8x8xf32>
      %cst_43 = arith.constant dense<0xFF800000> : vector<8xf32>
      %83 = vector.multi_reduction <maximumf>, %82, %cst_43 [1] : vector<8x8xf32> to vector<8xf32>
      %84 = vector.shape_cast %83 : vector<8xf32> to vector<8x1xf32>
      %85 = vector.broadcast %84 : vector<8x1xf32> to vector<8x8xf32>
      %86 = arith.subf %82, %85 : vector<8x8xf32>
      %87 = math.exp %86 : vector<8x8xf32>
      %cst_44 = arith.constant dense<0.000000e+00> : vector<8xf32>
      %88 = vector.multi_reduction <add>, %87, %cst_44 [1] : vector<8x8xf32> to vector<8xf32>
      %89 = vector.shape_cast %88 : vector<8xf32> to vector<8x1xf32>
      %90 = vector.broadcast %89 : vector<8x1xf32> to vector<8x8xf32>
      %91 = arith.divf %87, %90 : vector<8x8xf32>
      %92 = arith.truncf %91 : vector<8x8xf32> to vector<8x8xbf16>
      %cst_45 = arith.constant dense<0.000000e+00> : vector<8x8xf32>
      %93 = tpu.matmul %92, %81, %cst_45 {dimension_numbers = #tpu.dot_dimension_numbers<[1], [0], [0], [1], [0, 0, 1, 1], [], []>} : vector<8x8xbf16>, vector<8x8xbf16>, vector<8x8xf32> -> vector<8x8xf32>
      %94 = arith.truncf %93 : vector<8x8xf32> to vector<8x8xbf16>
      %c0_46 = arith.constant 0 : index
      %c0_47 = arith.constant 0 : index
      %c0_48 = arith.constant 0 : index
      %95 = vector.load %arg7[%c0_46, %c0_47, %c0_48] : memref<4x8x32xbf16, #tpu.memory_space<vmem>>, vector<1x8x32xbf16>
      %96 = vector.shape_cast %95 : vector<1x8x32xbf16> to vector<8x32xbf16>
      %cst_49 = arith.constant dense<0.000000e+00> : vector<8x32xf32>
      %97 = tpu.matmul %94, %96, %cst_49 {dimension_numbers = #tpu.dot_dimension_numbers<[1], [0], [0], [1], [0, 0, 1, 1], [], []>} : vector<8x8xbf16>, vector<8x32xbf16>, vector<8x32xf32> -> vector<8x32xf32>
      %98 = vector.extract_strided_slice %74 {offsets = [0, 8], sizes = [8, 8], strides = [1, 1]} : vector<8x32xbf16> to vector<8x8xbf16>
      %99 = vector.extract_strided_slice %76 {offsets = [0, 8], sizes = [8, 8], strides = [1, 1]} : vector<8x32xbf16> to vector<8x8xbf16>
      %100 = vector.extract_strided_slice %78 {offsets = [0, 8], sizes = [8, 8], strides = [1, 1]} : vector<8x32xbf16> to vector<8x8xbf16>
      %cst_50 = arith.constant dense<0.000000e+00> : vector<8x8xf32>
      %101 = tpu.matmul %98, %99, %cst_50 {dimension_numbers = #tpu.dot_dimension_numbers<[1], [1], [0], [0], [0, 0, 1, 0], [], []>} : vector<8x8xbf16>, vector<8x8xbf16>, vector<8x8xf32> -> vector<8x8xf32>
      %cst_51 = arith.constant dense<0xFF800000> : vector<8xf32>
      %102 = vector.multi_reduction <maximumf>, %101, %cst_51 [1] : vector<8x8xf32> to vector<8xf32>
      %103 = vector.shape_cast %102 : vector<8xf32> to vector<8x1xf32>
      %104 = vector.broadcast %103 : vector<8x1xf32> to vector<8x8xf32>
      %105 = arith.subf %101, %104 : vector<8x8xf32>
      %106 = math.exp %105 : vector<8x8xf32>
      %cst_52 = arith.constant dense<0.000000e+00> : vector<8xf32>
      %107 = vector.multi_reduction <add>, %106, %cst_52 [1] : vector<8x8xf32> to vector<8xf32>
      %108 = vector.shape_cast %107 : vector<8xf32> to vector<8x1xf32>
      %109 = vector.broadcast %108 : vector<8x1xf32> to vector<8x8xf32>
      %110 = arith.divf %106, %109 : vector<8x8xf32>
      %111 = arith.truncf %110 : vector<8x8xf32> to vector<8x8xbf16>
      %cst_53 = arith.constant dense<0.000000e+00> : vector<8x8xf32>
      %112 = tpu.matmul %111, %100, %cst_53 {dimension_numbers = #tpu.dot_dimension_numbers<[1], [0], [0], [1], [0, 0, 1, 1], [], []>} : vector<8x8xbf16>, vector<8x8xbf16>, vector<8x8xf32> -> vector<8x8xf32>
      %113 = arith.truncf %112 : vector<8x8xf32> to vector<8x8xbf16>
      %c1 = arith.constant 1 : index
      %c0_54 = arith.constant 0 : index
      %c0_55 = arith.constant 0 : index
      %114 = vector.load %arg7[%c1, %c0_54, %c0_55] : memref<4x8x32xbf16, #tpu.memory_space<vmem>>, vector<1x8x32xbf16>
      %115 = vector.shape_cast %114 : vector<1x8x32xbf16> to vector<8x32xbf16>
      %cst_56 = arith.constant dense<0.000000e+00> : vector<8x32xf32>
      %116 = tpu.matmul %113, %115, %cst_56 {dimension_numbers = #tpu.dot_dimension_numbers<[1], [0], [0], [1], [0, 0, 1, 1], [], []>} : vector<8x8xbf16>, vector<8x32xbf16>, vector<8x32xf32> -> vector<8x32xf32>
      %117 = arith.addf %97, %116 : vector<8x32xf32>
      %118 = vector.extract_strided_slice %74 {offsets = [0, 16], sizes = [8, 8], strides = [1, 1]} : vector<8x32xbf16> to vector<8x8xbf16>
      %119 = vector.extract_strided_slice %76 {offsets = [0, 16], sizes = [8, 8], strides = [1, 1]} : vector<8x32xbf16> to vector<8x8xbf16>
      %120 = vector.extract_strided_slice %78 {offsets = [0, 16], sizes = [8, 8], strides = [1, 1]} : vector<8x32xbf16> to vector<8x8xbf16>
      %cst_57 = arith.constant dense<0.000000e+00> : vector<8x8xf32>
      %121 = tpu.matmul %118, %119, %cst_57 {dimension_numbers = #tpu.dot_dimension_numbers<[1], [1], [0], [0], [0, 0, 1, 0], [], []>} : vector<8x8xbf16>, vector<8x8xbf16>, vector<8x8xf32> -> vector<8x8xf32>
      %cst_58 = arith.constant dense<0xFF800000> : vector<8xf32>
      %122 = vector.multi_reduction <maximumf>, %121, %cst_58 [1] : vector<8x8xf32> to vector<8xf32>
      %123 = vector.shape_cast %122 : vector<8xf32> to vector<8x1xf32>
      %124 = vector.broadcast %123 : vector<8x1xf32> to vector<8x8xf32>
      %125 = arith.subf %121, %124 : vector<8x8xf32>
      %126 = math.exp %125 : vector<8x8xf32>
      %cst_59 = arith.constant dense<0.000000e+00> : vector<8xf32>
      %127 = vector.multi_reduction <add>, %126, %cst_59 [1] : vector<8x8xf32> to vector<8xf32>
      %128 = vector.shape_cast %127 : vector<8xf32> to vector<8x1xf32>
      %129 = vector.broadcast %128 : vector<8x1xf32> to vector<8x8xf32>
      %130 = arith.divf %126, %129 : vector<8x8xf32>
      %131 = arith.truncf %130 : vector<8x8xf32> to vector<8x8xbf16>
      %cst_60 = arith.constant dense<0.000000e+00> : vector<8x8xf32>
      %132 = tpu.matmul %131, %120, %cst_60 {dimension_numbers = #tpu.dot_dimension_numbers<[1], [0], [0], [1], [0, 0, 1, 1], [], []>} : vector<8x8xbf16>, vector<8x8xbf16>, vector<8x8xf32> -> vector<8x8xf32>
      %133 = arith.truncf %132 : vector<8x8xf32> to vector<8x8xbf16>
      %c2 = arith.constant 2 : index
      %c0_61 = arith.constant 0 : index
      %c0_62 = arith.constant 0 : index
      %134 = vector.load %arg7[%c2, %c0_61, %c0_62] : memref<4x8x32xbf16, #tpu.memory_space<vmem>>, vector<1x8x32xbf16>
      %135 = vector.shape_cast %134 : vector<1x8x32xbf16> to vector<8x32xbf16>
      %cst_63 = arith.constant dense<0.000000e+00> : vector<8x32xf32>
      %136 = tpu.matmul %133, %135, %cst_63 {dimension_numbers = #tpu.dot_dimension_numbers<[1], [0], [0], [1], [0, 0, 1, 1], [], []>} : vector<8x8xbf16>, vector<8x32xbf16>, vector<8x32xf32> -> vector<8x32xf32>
      %137 = arith.addf %117, %136 : vector<8x32xf32>
      %138 = vector.extract_strided_slice %74 {offsets = [0, 24], sizes = [8, 8], strides = [1, 1]} : vector<8x32xbf16> to vector<8x8xbf16>
      %139 = vector.extract_strided_slice %76 {offsets = [0, 24], sizes = [8, 8], strides = [1, 1]} : vector<8x32xbf16> to vector<8x8xbf16>
      %140 = vector.extract_strided_slice %78 {offsets = [0, 24], sizes = [8, 8], strides = [1, 1]} : vector<8x32xbf16> to vector<8x8xbf16>
      %cst_64 = arith.constant dense<0.000000e+00> : vector<8x8xf32>
      %141 = tpu.matmul %138, %139, %cst_64 {dimension_numbers = #tpu.dot_dimension_numbers<[1], [1], [0], [0], [0, 0, 1, 0], [], []>} : vector<8x8xbf16>, vector<8x8xbf16>, vector<8x8xf32> -> vector<8x8xf32>
      %cst_65 = arith.constant dense<0xFF800000> : vector<8xf32>
      %142 = vector.multi_reduction <maximumf>, %141, %cst_65 [1] : vector<8x8xf32> to vector<8xf32>
      %143 = vector.shape_cast %142 : vector<8xf32> to vector<8x1xf32>
      %144 = vector.broadcast %143 : vector<8x1xf32> to vector<8x8xf32>
      %145 = arith.subf %141, %144 : vector<8x8xf32>
      %146 = math.exp %145 : vector<8x8xf32>
      %cst_66 = arith.constant dense<0.000000e+00> : vector<8xf32>
      %147 = vector.multi_reduction <add>, %146, %cst_66 [1] : vector<8x8xf32> to vector<8xf32>
      %148 = vector.shape_cast %147 : vector<8xf32> to vector<8x1xf32>
      %149 = vector.broadcast %148 : vector<8x1xf32> to vector<8x8xf32>
      %150 = arith.divf %146, %149 : vector<8x8xf32>
      %151 = arith.truncf %150 : vector<8x8xf32> to vector<8x8xbf16>
      %cst_67 = arith.constant dense<0.000000e+00> : vector<8x8xf32>
      %152 = tpu.matmul %151, %140, %cst_67 {dimension_numbers = #tpu.dot_dimension_numbers<[1], [0], [0], [1], [0, 0, 1, 1], [], []>} : vector<8x8xbf16>, vector<8x8xbf16>, vector<8x8xf32> -> vector<8x8xf32>
      %153 = arith.truncf %152 : vector<8x8xf32> to vector<8x8xbf16>
      %c3 = arith.constant 3 : index
      %c0_68 = arith.constant 0 : index
      %c0_69 = arith.constant 0 : index
      %154 = vector.load %arg7[%c3, %c0_68, %c0_69] : memref<4x8x32xbf16, #tpu.memory_space<vmem>>, vector<1x8x32xbf16>
      %155 = vector.shape_cast %154 : vector<1x8x32xbf16> to vector<8x32xbf16>
      %cst_70 = arith.constant dense<0.000000e+00> : vector<8x32xf32>
      %156 = tpu.matmul %153, %155, %cst_70 {dimension_numbers = #tpu.dot_dimension_numbers<[1], [0], [0], [1], [0, 0, 1, 1], [], []>} : vector<8x8xbf16>, vector<8x32xbf16>, vector<8x32xf32> -> vector<8x32xf32>
      %157 = arith.addf %137, %156 : vector<8x32xf32>
      %c0_71 = arith.constant 0 : index
      %c0_72 = arith.constant 0 : index
      %158 = vector.load %arg8[%c0_71, %c0_72] : memref<1x32xf32, #tpu.memory_space<vmem>>, vector<1x32xf32>
      %159 = vector.broadcast %158 : vector<1x32xf32> to vector<8x32xf32>
      %160 = arith.addf %157, %159 : vector<8x32xf32>
      %161 = arith.addf %160, %40 : vector<8x32xf32>
      %c0_73 = arith.constant 0 : index
      %c0_74 = arith.constant 0 : index
      %162 = vector.load %arg9[%c0_73, %c0_74] : memref<1x32xf32, #tpu.memory_space<vmem>>, vector<1x32xf32>
      %c0_75 = arith.constant 0 : index
      %c0_76 = arith.constant 0 : index
      %163 = vector.load %arg10[%c0_75, %c0_76] : memref<1x32xf32, #tpu.memory_space<vmem>>, vector<1x32xf32>
      %cst_77 = arith.constant dense<0.000000e+00> : vector<8xf32>
      %164 = vector.multi_reduction <add>, %161, %cst_77 [1] : vector<8x32xf32> to vector<8xf32>
      %165 = vector.shape_cast %164 : vector<8xf32> to vector<8x1xf32>
      %cst_78 = arith.constant 3.200000e+01 : f32
      %166 = vector.broadcast %cst_78 : f32 to vector<8x1xf32>
      %167 = arith.divf %165, %166 : vector<8x1xf32>
      %168 = vector.broadcast %167 : vector<8x1xf32> to vector<8x32xf32>
      %169 = arith.subf %161, %168 : vector<8x32xf32>
      %170 = arith.mulf %169, %169 : vector<8x32xf32>
      %cst_79 = arith.constant dense<0.000000e+00> : vector<8xf32>
      %171 = vector.multi_reduction <add>, %170, %cst_79 [1] : vector<8x32xf32> to vector<8xf32>
      %172 = vector.shape_cast %171 : vector<8xf32> to vector<8x1xf32>
      %cst_80 = arith.constant 3.200000e+01 : f32
      %173 = vector.broadcast %cst_80 : f32 to vector<8x1xf32>
      %174 = arith.divf %172, %173 : vector<8x1xf32>
      %175 = vector.broadcast %167 : vector<8x1xf32> to vector<8x32xf32>
      %176 = arith.subf %161, %175 : vector<8x32xf32>
      %cst_81 = arith.constant 9.99999974E-6 : f32
      %177 = vector.broadcast %cst_81 : f32 to vector<8x1xf32>
      %178 = arith.addf %174, %177 : vector<8x1xf32>
      %179 = math.rsqrt %178 : vector<8x1xf32>
      %180 = vector.broadcast %179 : vector<8x1xf32> to vector<8x32xf32>
      %181 = arith.mulf %176, %180 : vector<8x32xf32>
      %182 = vector.broadcast %162 : vector<1x32xf32> to vector<8x32xf32>
      %183 = arith.mulf %181, %182 : vector<8x32xf32>
      %184 = vector.broadcast %163 : vector<1x32xf32> to vector<8x32xf32>
      %185 = arith.addf %183, %184 : vector<8x32xf32>
      %186 = arith.truncf %185 : vector<8x32xf32> to vector<8x32xbf16>
      %c0_82 = arith.constant 0 : index
      %c0_83 = arith.constant 0 : index
      %187 = vector.load %arg11[%c0_82, %c0_83] : memref<32x4xbf16, #tpu.memory_space<vmem>>, vector<32x4xbf16>
      %cst_84 = arith.constant dense<0.000000e+00> : vector<8x4xf32>
      %188 = tpu.matmul %186, %187, %cst_84 {dimension_numbers = #tpu.dot_dimension_numbers<[1], [0], [0], [1], [0, 0, 1, 1], [], []>} : vector<8x32xbf16>, vector<32x4xbf16>, vector<8x4xf32> -> vector<8x4xf32>
      %c0_85 = arith.constant 0 : index
      %c0_86 = arith.constant 0 : index
      %189 = vector.load %arg12[%c0_85, %c0_86] : memref<1x4xf32, #tpu.memory_space<vmem>>, vector<1x4xf32>
      %190 = vector.broadcast %189 : vector<1x4xf32> to vector<8x4xf32>
      %191 = arith.addf %188, %190 : vector<8x4xf32>
      %cst_87 = arith.constant dense<0xFF800000> : vector<8xf32>
      %192 = vector.multi_reduction <maximumf>, %191, %cst_87 [1] : vector<8x4xf32> to vector<8xf32>
      %193 = vector.shape_cast %192 : vector<8xf32> to vector<8x1xf32>
      %194 = vector.broadcast %193 : vector<8x1xf32> to vector<8x4xf32>
      %195 = arith.subf %191, %194 : vector<8x4xf32>
      %196 = math.exp %195 : vector<8x4xf32>
      %cst_88 = arith.constant dense<0.000000e+00> : vector<8xf32>
      %197 = vector.multi_reduction <add>, %196, %cst_88 [1] : vector<8x4xf32> to vector<8xf32>
      %198 = vector.shape_cast %197 : vector<8xf32> to vector<8x1xf32>
      %199 = vector.broadcast %198 : vector<8x1xf32> to vector<8x4xf32>
      %200 = arith.divf %196, %199 : vector<8x4xf32>
      %false = arith.constant false
      %201 = vector.broadcast %false : i1 to vector<8x4xi1>
      %cst_89 = arith.constant dense<0xFF800000> : vector<8xf32>
      %202 = vector.multi_reduction <maximumf>, %191, %cst_89 [1] : vector<8x4xf32> to vector<8xf32>
      %203 = vector.shape_cast %202 : vector<8xf32> to vector<8x1xf32>
      %204 = vector.broadcast %203 : vector<8x1xf32> to vector<8x4xf32>
      %205 = arith.cmpf oeq, %191, %204 : vector<8x4xf32>
      %206 = arith.ori %201, %205 : vector<8x4xi1>
      %cst_90 = arith.constant 0xFF800000 : f32
      %207 = vector.broadcast %cst_90 : f32 to vector<8x4xf32>
      %208 = arith.select %205, %207, %191 : vector<8x4xi1>, vector<8x4xf32>
      %cst_91 = arith.constant dense<0xFF800000> : vector<8xf32>
      %209 = vector.multi_reduction <maximumf>, %208, %cst_91 [1] : vector<8x4xf32> to vector<8xf32>
      %210 = vector.shape_cast %209 : vector<8xf32> to vector<8x1xf32>
      %211 = vector.broadcast %210 : vector<8x1xf32> to vector<8x4xf32>
      %212 = arith.cmpf oeq, %208, %211 : vector<8x4xf32>
      %213 = arith.ori %206, %212 : vector<8x4xi1>
      %cst_92 = arith.constant 0.000000e+00 : f32
      %214 = vector.broadcast %cst_92 : f32 to vector<8x4xf32>
      %215 = arith.select %213, %200, %214 : vector<8x4xi1>, vector<8x4xf32>
      %cst_93 = arith.constant dense<0.000000e+00> : vector<8xf32>
      %216 = vector.multi_reduction <add>, %215, %cst_93 [1] : vector<8x4xf32> to vector<8xf32>
      %217 = vector.shape_cast %216 : vector<8xf32> to vector<8x1xf32>
      %218 = tpu.reciprocal %217 {approx = true} : vector<8x1xf32> -> vector<8x1xf32>
      %219 = vector.broadcast %218 : vector<8x1xf32> to vector<8x4xf32>
      %220 = arith.mulf %215, %219 : vector<8x4xf32>
      %c0_94 = arith.constant 0 : index
      %c0_95 = arith.constant 0 : index
      %221 = vector.load %arg18[%c0_94, %c0_95] : memref<8x32xf32, #tpu.memory_space<vmem>>, vector<8x32xf32>
      tpu.vector_store %arg18[%c0_94, %c0_95], %161 {strides = array<i32>} : memref<8x32xf32, #tpu.memory_space<vmem>>, vector<8x32xf32>,
      %222 = arith.truncf %185 : vector<8x32xf32> to vector<8x32xbf16>
      %c0_96 = arith.constant 0 : index
      %c0_97 = arith.constant 0 : index
      %223 = vector.load %arg19[%c0_96, %c0_97] : memref<8x32xbf16, #tpu.memory_space<vmem>>, vector<8x32xbf16>
      tpu.vector_store %arg19[%c0_96, %c0_97], %222 {strides = array<i32>} : memref<8x32xbf16, #tpu.memory_space<vmem>>, vector<8x32xbf16>,
      %c0_98 = arith.constant 0 : index
      %c0_99 = arith.constant 0 : index
      %224 = vector.load %arg20[%c0_98, %c0_99] : memref<8x4xf32, #tpu.memory_space<vmem>>, vector<8x4xf32>
      tpu.vector_store %arg20[%c0_98, %c0_99], %220 {strides = array<i32>} : memref<8x4xf32, #tpu.memory_space<vmem>>, vector<8x4xf32>,
    } else {
    }
    %c0 = arith.constant 0 : index
    %c0_1 = arith.constant 0 : index
    %3 = vector.load %arg19[%c0, %c0_1] : memref<8x32xbf16, #tpu.memory_space<vmem>>, vector<8x32xbf16>
    %c0_2 = arith.constant 0 : index
    %c0_3 = arith.constant 0 : index
    %c0_4 = arith.constant 0 : index
    %4 = vector.load %arg13[%c0_2, %c0_3, %c0_4] : memref<1x32x64xbf16, #tpu.memory_space<vmem>>, vector<1x32x64xbf16>
    %5 = vector.shape_cast %4 : vector<1x32x64xbf16> to vector<32x64xbf16>
    %cst = arith.constant dense<0.000000e+00> : vector<8x64xf32>
    %6 = tpu.matmul %3, %5, %cst {dimension_numbers = #tpu.dot_dimension_numbers<[1], [0], [0], [1], [0, 0, 1, 1], [], []>} : vector<8x32xbf16>, vector<32x64xbf16>, vector<8x64xf32> -> vector<8x64xf32>
    %c0_5 = arith.constant 0 : index
    %c0_6 = arith.constant 0 : index
    %c0_7 = arith.constant 0 : index
    %7 = vector.load %arg14[%c0_5, %c0_6, %c0_7] : memref<1x1x64xf32, #tpu.memory_space<vmem>>, vector<1x1x64xf32>
    %8 = vector.shape_cast %7 : vector<1x1x64xf32> to vector<1x64xf32>
    %9 = vector.broadcast %8 : vector<1x64xf32> to vector<8x64xf32>
    %10 = arith.addf %6, %9 : vector<8x64xf32>
    %cst_8 = arith.constant 0.000000e+00 : f32
    %11 = vector.broadcast %cst_8 : f32 to vector<8x64xf32>
    %12 = arith.maximumf %10, %11 : vector<8x64xf32>
    %13 = arith.truncf %12 : vector<8x64xf32> to vector<8x64xbf16>
    %c0_9 = arith.constant 0 : index
    %c0_10 = arith.constant 0 : index
    %c0_11 = arith.constant 0 : index
    %14 = vector.load %arg15[%c0_9, %c0_10, %c0_11] : memref<1x64x32xbf16, #tpu.memory_space<vmem>>, vector<1x64x32xbf16>
    %15 = vector.shape_cast %14 : vector<1x64x32xbf16> to vector<64x32xbf16>
    %cst_12 = arith.constant dense<0.000000e+00> : vector<8x32xf32>
    %16 = tpu.matmul %13, %15, %cst_12 {dimension_numbers = #tpu.dot_dimension_numbers<[1], [0], [0], [1], [0, 0, 1, 1], [], []>} : vector<8x64xbf16>, vector<64x32xbf16>, vector<8x32xf32> -> vector<8x32xf32>
    %c0_13 = arith.constant 0 : index
    %c0_14 = arith.constant 0 : index
    %c0_15 = arith.constant 0 : index
    %17 = vector.load %arg16[%c0_13, %c0_14, %c0_15] : memref<1x1x32xf32, #tpu.memory_space<vmem>>, vector<1x1x32xf32>
    %18 = vector.shape_cast %17 : vector<1x1x32xf32> to vector<1x32xf32>
    %19 = vector.broadcast %18 : vector<1x32xf32> to vector<8x32xf32>
    %20 = arith.addf %16, %19 : vector<8x32xf32>
    %21 = tpu.iota {dimensions = array<i32: 1>} : vector<1x4xi32>
    %22 = vector.broadcast %arg1 : i32 to vector<1x4xi32>
    %23 = arith.cmpi eq, %21, %22 : vector<1x4xi32>
    %24 = arith.extui %23 : vector<1x4xi1> to vector<1x4xi32>
    %25 = arith.sitofp %24 : vector<1x4xi32> to vector<1x4xf32>
    %c0_16 = arith.constant 0 : index
    %c0_17 = arith.constant 0 : index
    %26 = vector.load %arg20[%c0_16, %c0_17] : memref<8x4xf32, #tpu.memory_space<vmem>>, vector<8x4xf32>
    %27 = vector.broadcast %25 : vector<1x4xf32> to vector<8x4xf32>
    %28 = arith.mulf %26, %27 : vector<8x4xf32>
    %cst_18 = arith.constant dense<0.000000e+00> : vector<8xf32>
    %29 = vector.multi_reduction <add>, %28, %cst_18 [1] : vector<8x4xf32> to vector<8xf32>
    %30 = vector.shape_cast %29 : vector<8xf32> to vector<8x1xf32>
    %c0_19 = arith.constant 0 : index
    %c0_20 = arith.constant 0 : index
    %31 = vector.load %arg18[%c0_19, %c0_20] : memref<8x32xf32, #tpu.memory_space<vmem>>, vector<8x32xf32>
    %32 = vector.broadcast %30 : vector<8x1xf32> to vector<8x32xf32>
    %33 = arith.mulf %32, %20 : vector<8x32xf32>
    %34 = arith.addf %31, %33 : vector<8x32xf32>
    %c0_21 = arith.constant 0 : index
    %c0_22 = arith.constant 0 : index
    %35 = vector.load %arg18[%c0_21, %c0_22] : memref<8x32xf32, #tpu.memory_space<vmem>>, vector<8x32xf32>
    tpu.vector_store %arg18[%c0_21, %c0_22], %34 {strides = array<i32>} : memref<8x32xf32, #tpu.memory_space<vmem>>, vector<8x32xf32>,
    %c3_i32 = arith.constant 3 : i32
    %36 = arith.cmpi eq, %arg1, %c3_i32 : i32
    %37 = arith.extui %36 : i1 to i32
    %c0_i32_23 = arith.constant 0 : i32
    %38 = arith.cmpi ne, %37, %c0_i32_23 : i32
    scf.if %38 {
      %c0_24 = arith.constant 0 : index
      %c0_25 = arith.constant 0 : index
      %39 = vector.load %arg18[%c0_24, %c0_25] : memref<8x32xf32, #tpu.memory_space<vmem>>, vector<8x32xf32>
      %40 = vector.shape_cast %39 : vector<8x32xf32> to vector<1x8x32xf32>
      %c0_26 = arith.constant 0 : index
      %c0_27 = arith.constant 0 : index
      %c0_28 = arith.constant 0 : index
      %41 = vector.load %arg17[%c0_26, %c0_27, %c0_28] : memref<1x8x32xf32, #tpu.memory_space<vmem>>, vector<1x8x32xf32>
      tpu.vector_store %arg17[%c0_26, %c0_27, %c0_28], %40 {strides = array<i32>} : memref<1x8x32xf32, #tpu.memory_space<vmem>>, vector<1x8x32xf32>,
    } else {
    }
    return
  }
  func.func @transform_0(%arg0: i32, %arg1: i32) -> (i32, i32, i32) {
    %c0_i32 = arith.constant 0 : i32
    %c0_i32_0 = arith.constant 0 : i32
    %c0_i32_1 = arith.constant 0 : i32
    return %arg0, %c0_i32, %c0_i32_0 : i32, i32, i32
  }
  func.func @transform_1(%arg0: i32, %arg1: i32) -> (i32, i32) {
    %c0_i32 = arith.constant 0 : i32
    %c0_i32_0 = arith.constant 0 : i32
    %c0_i32_1 = arith.constant 0 : i32
    return %c0_i32, %c0_i32_0 : i32, i32
  }
  func.func @transform_2(%arg0: i32, %arg1: i32) -> (i32, i32) {
    %c0_i32 = arith.constant 0 : i32
    %c0_i32_0 = arith.constant 0 : i32
    %c0_i32_1 = arith.constant 0 : i32
    return %c0_i32, %c0_i32_0 : i32, i32
  }
  func.func @transform_3(%arg0: i32, %arg1: i32) -> (i32, i32) {
    %c0_i32 = arith.constant 0 : i32
    %c0_i32_0 = arith.constant 0 : i32
    %c0_i32_1 = arith.constant 0 : i32
    return %c0_i32, %c0_i32_0 : i32, i32
  }
  func.func @transform_4(%arg0: i32, %arg1: i32) -> (i32, i32) {
    %c0_i32 = arith.constant 0 : i32
    %c0_i32_0 = arith.constant 0 : i32
    %c0_i32_1 = arith.constant 0 : i32
    return %c0_i32, %c0_i32_0 : i32, i32
  }
  func.func @transform_5(%arg0: i32, %arg1: i32) -> (i32, i32, i32) {
    %c0_i32 = arith.constant 0 : i32
    %c0_i32_0 = arith.constant 0 : i32
    %c0_i32_1 = arith.constant 0 : i32
    %c0_i32_2 = arith.constant 0 : i32
    return %c0_i32, %c0_i32_0, %c0_i32_1 : i32, i32, i32
  }
  func.func @transform_6(%arg0: i32, %arg1: i32) -> (i32, i32) {
    %c0_i32 = arith.constant 0 : i32
    %c0_i32_0 = arith.constant 0 : i32
    %c0_i32_1 = arith.constant 0 : i32
    return %c0_i32, %c0_i32_0 : i32, i32
  }
  func.func @transform_7(%arg0: i32, %arg1: i32) -> (i32, i32) {
    %c0_i32 = arith.constant 0 : i32
    %c0_i32_0 = arith.constant 0 : i32
    %c0_i32_1 = arith.constant 0 : i32
    return %c0_i32, %c0_i32_0 : i32, i32
  }
  func.func @transform_8(%arg0: i32, %arg1: i32) -> (i32, i32) {
    %c0_i32 = arith.constant 0 : i32
    %c0_i32_0 = arith.constant 0 : i32
    %c0_i32_1 = arith.constant 0 : i32
    return %c0_i32, %c0_i32_0 : i32, i32
  }
  func.func @transform_9(%arg0: i32, %arg1: i32) -> (i32, i32) {
    %c0_i32 = arith.constant 0 : i32
    %c0_i32_0 = arith.constant 0 : i32
    %c0_i32_1 = arith.constant 0 : i32
    return %c0_i32, %c0_i32_0 : i32, i32
  }
  func.func @transform_10(%arg0: i32, %arg1: i32) -> (i32, i32) {
    %c0_i32 = arith.constant 0 : i32
    %c0_i32_0 = arith.constant 0 : i32
    %c0_i32_1 = arith.constant 0 : i32
    return %c0_i32, %c0_i32_0 : i32, i32
  }
  func.func @transform_11(%arg0: i32, %arg1: i32) -> (i32, i32, i32) {
    %c0_i32 = arith.constant 0 : i32
    %c0_i32_0 = arith.constant 0 : i32
    %c0_i32_1 = arith.constant 0 : i32
    return %arg1, %c0_i32, %c0_i32_0 : i32, i32, i32
  }
  func.func @transform_12(%arg0: i32, %arg1: i32) -> (i32, i32, i32) {
    %c0_i32 = arith.constant 0 : i32
    %c0_i32_0 = arith.constant 0 : i32
    %c0_i32_1 = arith.constant 0 : i32
    return %arg1, %c0_i32, %c0_i32_0 : i32, i32, i32
  }
  func.func @transform_13(%arg0: i32, %arg1: i32) -> (i32, i32, i32) {
    %c0_i32 = arith.constant 0 : i32
    %c0_i32_0 = arith.constant 0 : i32
    %c0_i32_1 = arith.constant 0 : i32
    return %arg1, %c0_i32, %c0_i32_0 : i32, i32, i32
  }
  func.func @transform_14(%arg0: i32, %arg1: i32) -> (i32, i32, i32) {
    %c0_i32 = arith.constant 0 : i32
    %c0_i32_0 = arith.constant 0 : i32
    %c0_i32_1 = arith.constant 0 : i32
    return %arg1, %c0_i32, %c0_i32_0 : i32, i32, i32
  }
  func.func @transform_15(%arg0: i32, %arg1: i32) -> (i32, i32, i32) {
    %c0_i32 = arith.constant 0 : i32
    %c0_i32_0 = arith.constant 0 : i32
    %c0_i32_1 = arith.constant 0 : i32
    return %arg0, %c0_i32, %c0_i32_0 : i32, i32, i32
  }
}

</mosaic_0001>

<llo_original>
// kernel: tpu_custom_call.1
$region0: #{tpu_custom_call.1}
  #allocation0 [shape = 'u32[]', space=smem, size = 0x4, offset = 0x4, fixed_abs, tag = 'smem constant byte address 0x4 - core index']
  #allocation1 [shape = 'u32[144,128]{1,0:T(1,128)}', space=vmem, size = 0x12000, scoped, tag = 'internal scratch']
  #allocation2 [shape = 'f32[8,32]{1,0:T(8,128)}', space=vmem, size = 0x1000, scoped, tag = 'scratch operand']
  #allocation3 [shape = 'bf16[8,32]{1,0:T(8,128)(2,1)}', space=vmem, size = 0x800, scoped, tag = 'scratch operand']
  #allocation4 [shape = 'f32[8,4]{1,0:T(8,128)}', space=vmem, size = 0x1000, scoped, tag = 'scratch operand']
  %s0 = inlined_call_operand.vmem [shape: f32[2,8,32], index: 0, kind: input, shape index: {}]
  %s1 = inlined_call_operand.vmem [shape: f32[1,32], index: 1, kind: input, shape index: {}]
  %s2 = inlined_call_operand.vmem [shape: f32[1,32], index: 2, kind: input, shape index: {}]
  %s3 = inlined_call_operand.vmem [shape: bf16[32,96], index: 3, kind: input, shape index: {}]
  %s4 = inlined_call_operand.vmem [shape: f32[1,96], index: 4, kind: input, shape index: {}]
  %s5 = inlined_call_operand.vmem [shape: bf16[4,8,32], index: 5, kind: input, shape index: {}]
  %s6 = inlined_call_operand.vmem [shape: f32[1,32], index: 6, kind: input, shape index: {}]
  %s7 = inlined_call_operand.vmem [shape: f32[1,32], index: 7, kind: input, shape index: {}]
  %s8 = inlined_call_operand.vmem [shape: f32[1,32], index: 8, kind: input, shape index: {}]
  %s9 = inlined_call_operand.vmem [shape: bf16[32,4], index: 9, kind: input, shape index: {}]
  %s10 = inlined_call_operand.vmem [shape: f32[1,4], index: 10, kind: input, shape index: {}]
  %s11 = inlined_call_operand.vmem [shape: bf16[4,32,64], index: 11, kind: input, shape index: {}]
  %s12 = inlined_call_operand.vmem [shape: f32[4,1,64], index: 12, kind: input, shape index: {}]
  %s13 = inlined_call_operand.vmem [shape: bf16[4,64,32], index: 13, kind: input, shape index: {}]
  %s14 = inlined_call_operand.vmem [shape: f32[4,1,32], index: 14, kind: input, shape index: {}]
  %s15 = inlined_call_operand.hbm [shape: f32[2,8,32], index: 15, kind: output, shape index: {}]
  %s16 = sld [smem:[#allocation0]]
  $region101: #{tpu_custom_call.1} parent=0
    _
  %s18 = ssub.s32 1, %s16
  %s19 = scalar_select 0, %s18, %s16
  $region1: #{tpu_custom_call.1} parent=0
    #allocation5 [shape = 'u8[8192]{0}', space=vmem, size = 0x2000, scoped, tag = 'output window, operand 0']
    #allocation6 [shape = 's32[2]{0}', space=sflag, size = 0x8, scoped, tag = 'scoped memory for tpu_custom_call.1']
    %20 = vsyncpa [#allocation6], 0
    %s21 = scalar_lea.sflag [#allocation6], 1
    %22 = vsyncpa %s21, 0
    loop: start=0, step=1, limit=10
    $region2: #{tpu_custom_call.1} parent=1 // loop_pre_header
      _
    $region3: #{tpu_custom_call.1} parent=1 // loop_header
      %s24 = sphi 0, %s28
      %p25 = scmp.ge.s32.totalorder %s24, 10
      %s31 = sphi 0, %s43
      %s32 = sphi 0, %s39
      %s33 = sphi 0, %s31
      %s34 = sphi 0, %s32
      %s35 = sphi 0, %s33
      %s36 = sphi 0, %s34
      %s46 = sphi 0, %s48
      %s49 = sphi 0, %s46
      %s50 = sphi 0, %s49
      %s66 = sphi 0, %s50
      %s70 = sphi 0, %s70
      %s72 = sphi 0, %s70
      %s73 = sphi 0, %s72
      %s87 = sphi 0, %s73
      %s91 = sphi 0, %s91
      %s93 = sphi 0, %s91
      %s94 = sphi 0, %s93
      %s108 = sphi 0, %s94
      %s112 = sphi 0, %s112
      %s114 = sphi 0, %s112
      %s115 = sphi 0, %s114
      %s129 = sphi 0, %s115
      %s133 = sphi 0, %s133
      %s135 = sphi 0, %s133
      %s136 = sphi 0, %s135
      %s150 = sphi 0, %s136
      %s154 = sphi 0, %s154
      %s156 = sphi 0, %s154
      %s157 = sphi 0, %s156
      %s171 = sphi 0, %s157
      %s175 = sphi 0, %s175
      %s177 = sphi 0, %s175
      %s178 = sphi 0, %s177
      %s192 = sphi 0, %s178
      %s196 = sphi 0, %s196
      %s198 = sphi 0, %s196
      %s199 = sphi 0, %s198
      %s213 = sphi 0, %s199
      %s217 = sphi 0, %s217
      %s219 = sphi 0, %s217
      %s220 = sphi 0, %s219
      %s234 = sphi 0, %s220
      %s238 = sphi 0, %s238
      %s240 = sphi 0, %s238
      %s241 = sphi 0, %s240
      %s255 = sphi 0, %s241
      %s259 = sphi 0, %s259
      %s261 = sphi 0, %s259
      %s262 = sphi 0, %s261
      %s276 = sphi 0, %s262
      %s282 = sphi 0, %s284
      %s285 = sphi 0, %s282
      %s286 = sphi 0, %s285
      %s302 = sphi 0, %s286
      %s308 = sphi 0, %s310
      %s311 = sphi 0, %s308
      %s312 = sphi 0, %s311
      %s328 = sphi 0, %s312
      %s334 = sphi 0, %s336
      %s337 = sphi 0, %s334
      %s338 = sphi 0, %s337
      %s354 = sphi 0, %s338
      %s360 = sphi 0, %s362
      %s363 = sphi 0, %s360
      %s364 = sphi 0, %s363
      %s380 = sphi 0, %s364
      %s386 = sphi 0, %s388
      %s389 = sphi 0, %s386
      %s390 = sphi 0, %s389
      %s406 = sphi 0, %s390
    $region4: #{tpu_custom_call.1} parent=1 // loop_header_branch
      %27 = sbr.rel (%p25) target = $region8
    $region5: #{tpu_custom_call.1} parent=1 // loop_body
      %s29 = ssub.s32 %s24, 1
      %s30 = ssub.s32 %s24, 2
      %s37 = sadd.s32 1, %s32
      %p38 = scmp.ge.s32.totalorder %s37, 4
      %s39 = scalar_select %p38, 0, %s37
      %s40 = sadd.s32 1, %s31
      %s41 = scalar_select %p38, %s40, %s31
      %p42 = scmp.ge.s32.totalorder %s41, 2
      %s43 = scalar_select %p42, 0, %s41
      %s44 = ssub.s32 %s31, %s43
      %p45 = scmp.eq.s32.totalorder %s44, 0
      %s47 = sadd.s32 %s46, 1
      %s48 = scalar_select %p45, %s46, %s47
      %p51 = pneg %p45
      %p52 = scmp.eq.s32.totalorder %s24, 7
      %p53 = por %p51, %p52
      %p54 = scmp.ne.s32.totalorder %s46, %s49
      %p55 = scmp.eq.s32.totalorder %s24, 0
      %p56 = por %p54, %p55
      %p57 = scmp.ne.s32.totalorder %s46, %s49
      %p58 = scmp.eq.s32.totalorder %s29, 7
      %p59 = por %p57, %p58
      %p60 = scmp.ne.s32.totalorder %s49, %s50
      %p61 = scmp.eq.s32.totalorder %s29, 0
      %p62 = por %p60, %p61
      %p63 = scmp.ne.s32.totalorder %s49, %s50
      %p64 = scmp.eq.s32.totalorder %s30, 7
      %p65 = por %p63, %p64
      %p67 = scmp.ne.s32.totalorder %s50, %s66
      %p68 = scmp.eq.s32.totalorder %s30, 0
      %p69 = por %p67, %p68
      %s71 = sadd.s32 %s70, 1
      %p74 = scmp.eq.s32.totalorder %s24, 7
      %p75 = scmp.ne.s32.totalorder %s70, %s72
      %p76 = scmp.eq.s32.totalorder %s24, 0
      %p77 = por %p75, %p76
      %p78 = scmp.ne.s32.totalorder %s70, %s72
      %p79 = scmp.eq.s32.totalorder %s29, 7
      %p80 = por %p78, %p79
      %p81 = scmp.ne.s32.totalorder %s72, %s73
      %p82 = scmp.eq.s32.totalorder %s29, 0
      %p83 = por %p81, %p82
      %p84 = scmp.ne.s32.totalorder %s72, %s73
      %p85 = scmp.eq.s32.totalorder %s30, 7
      %p86 = por %p84, %p85
      %p88 = scmp.ne.s32.totalorder %s73, %s87
      %p89 = scmp.eq.s32.totalorder %s30, 0
      %p90 = por %p88, %p89
      %s92 = sadd.s32 %s91, 1
      %p95 = scmp.eq.s32.totalorder %s24, 7
      %p96 = scmp.ne.s32.totalorder %s91, %s93
      %p97 = scmp.eq.s32.totalorder %s24, 0
      %p98 = por %p96, %p97
      %p99 = scmp.ne.s32.totalorder %s91, %s93
      %p100 = scmp.eq.s32.totalorder %s29, 7
      %p101 = por %p99, %p100
      %p102 = scmp.ne.s32.totalorder %s93, %s94
      %p103 = scmp.eq.s32.totalorder %s29, 0
      %p104 = por %p102, %p103
      %p105 = scmp.ne.s32.totalorder %s93, %s94
      %p106 = scmp.eq.s32.totalorder %s30, 7
      %p107 = por %p105, %p106
      %p109 = scmp.ne.s32.totalorder %s94, %s108
      %p110 = scmp.eq.s32.totalorder %s30, 0
      %p111 = por %p109, %p110
      %s113 = sadd.s32 %s112, 1
      %p116 = scmp.eq.s32.totalorder %s24, 7
      %p117 = scmp.ne.s32.totalorder %s112, %s114
      %p118 = scmp.eq.s32.totalorder %s24, 0
      %p119 = por %p117, %p118
      %p120 = scmp.ne.s32.totalorder %s112, %s114
      %p121 = scmp.eq.s32.totalorder %s29, 7
      %p122 = por %p120, %p121
      %p123 = scmp.ne.s32.totalorder %s114, %s115
      %p124 = scmp.eq.s32.totalorder %s29, 0
      %p125 = por %p123, %p124
      %p126 = scmp.ne.s32.totalorder %s114, %s115
      %p127 = scmp.eq.s32.totalorder %s30, 7
      %p128 = por %p126, %p127
      %p130 = scmp.ne.s32.totalorder %s115, %s129
      %p131 = scmp.eq.s32.totalorder %s30, 0
      %p132 = por %p130, %p131
      %s134 = sadd.s32 %s133, 1
      %p137 = scmp.eq.s32.totalorder %s24, 7
      %p138 = scmp.ne.s32.totalorder %s133, %s135
      %p139 = scmp.eq.s32.totalorder %s24, 0
      %p140 = por %p138, %p139
      %p141 = scmp.ne.s32.totalorder %s133, %s135
      %p142 = scmp.eq.s32.totalorder %s29, 7
      %p143 = por %p141, %p142
      %p144 = scmp.ne.s32.totalorder %s135, %s136
      %p145 = scmp.eq.s32.totalorder %s29, 0
      %p146 = por %p144, %p145
      %p147 = scmp.ne.s32.totalorder %s135, %s136
      %p148 = scmp.eq.s32.totalorder %s30, 7
      %p149 = por %p147, %p148
      %p151 = scmp.ne.s32.totalorder %s136, %s150
      %p152 = scmp.eq.s32.totalorder %s30, 0
      %p153 = por %p151, %p152
      %s155 = sadd.s32 %s154, 1
      %p158 = scmp.eq.s32.totalorder %s24, 7
      %p159 = scmp.ne.s32.totalorder %s154, %s156
      %p160 = scmp.eq.s32.totalorder %s24, 0
      %p161 = por %p159, %p160
      %p162 = scmp.ne.s32.totalorder %s154, %s156
      %p163 = scmp.eq.s32.totalorder %s29, 7
      %p164 = por %p162, %p163
      %p165 = scmp.ne.s32.totalorder %s156, %s157
      %p166 = scmp.eq.s32.totalorder %s29, 0
      %p167 = por %p165, %p166
      %p168 = scmp.ne.s32.totalorder %s156, %s157
      %p169 = scmp.eq.s32.totalorder %s30, 7
      %p170 = por %p168, %p169
      %p172 = scmp.ne.s32.totalorder %s157, %s171
      %p173 = scmp.eq.s32.totalorder %s30, 0
      %p174 = por %p172, %p173
      %s176 = sadd.s32 %s175, 1
      %p179 = scmp.eq.s32.totalorder %s24, 7
      %p180 = scmp.ne.s32.totalorder %s175, %s177
      %p181 = scmp.eq.s32.totalorder %s24, 0
      %p182 = por %p180, %p181
      %p183 = scmp.ne.s32.totalorder %s175, %s177
      %p184 = scmp.eq.s32.totalorder %s29, 7
      %p185 = por %p183, %p184
      %p186 = scmp.ne.s32.totalorder %s177, %s178
      %p187 = scmp.eq.s32.totalorder %s29, 0
      %p188 = por %p186, %p187
      %p189 = scmp.ne.s32.totalorder %s177, %s178
      %p190 = scmp.eq.s32.totalorder %s30, 7
      %p191 = por %p189, %p190
      %p193 = scmp.ne.s32.totalorder %s178, %s192
      %p194 = scmp.eq.s32.totalorder %s30, 0
      %p195 = por %p193, %p194
      %s197 = sadd.s32 %s196, 1
      %p200 = scmp.eq.s32.totalorder %s24, 7
      %p201 = scmp.ne.s32.totalorder %s196, %s198
      %p202 = scmp.eq.s32.totalorder %s24, 0
      %p203 = por %p201, %p202
      %p204 = scmp.ne.s32.totalorder %s196, %s198
      %p205 = scmp.eq.s32.totalorder %s29, 7
      %p206 = por %p204, %p205
      %p207 = scmp.ne.s32.totalorder %s198, %s199
      %p208 = scmp.eq.s32.totalorder %s29, 0
      %p209 = por %p207, %p208
      %p210 = scmp.ne.s32.totalorder %s198, %s199
      %p211 = scmp.eq.s32.totalorder %s30, 7
      %p212 = por %p210, %p211
      %p214 = scmp.ne.s32.totalorder %s199, %s213
      %p215 = scmp.eq.s32.totalorder %s30, 0
      %p216 = por %p214, %p215
      %s218 = sadd.s32 %s217, 1
      %p221 = scmp.eq.s32.totalorder %s24, 7
      %p222 = scmp.ne.s32.totalorder %s217, %s219
      %p223 = scmp.eq.s32.totalorder %s24, 0
      %p224 = por %p222, %p223
      %p225 = scmp.ne.s32.totalorder %s217, %s219
      %p226 = scmp.eq.s32.totalorder %s29, 7
      %p227 = por %p225, %p226
      %p228 = scmp.ne.s32.totalorder %s219, %s220
      %p229 = scmp.eq.s32.totalorder %s29, 0
      %p230 = por %p228, %p229
      %p231 = scmp.ne.s32.totalorder %s219, %s220
      %p232 = scmp.eq.s32.totalorder %s30, 7
      %p233 = por %p231, %p232
      %p235 = scmp.ne.s32.totalorder %s220, %s234
      %p236 = scmp.eq.s32.totalorder %s30, 0
      %p237 = por %p235, %p236
      %s239 = sadd.s32 %s238, 1
      %p242 = scmp.eq.s32.totalorder %s24, 7
      %p243 = scmp.ne.s32.totalorder %s238, %s240
      %p244 = scmp.eq.s32.totalorder %s24, 0
      %p245 = por %p243, %p244
      %p246 = scmp.ne.s32.totalorder %s238, %s240
      %p247 = scmp.eq.s32.totalorder %s29, 7
      %p248 = por %p246, %p247
      %p249 = scmp.ne.s32.totalorder %s240, %s241
      %p250 = scmp.eq.s32.totalorder %s29, 0
      %p251 = por %p249, %p250
      %p252 = scmp.ne.s32.totalorder %s240, %s241
      %p253 = scmp.eq.s32.totalorder %s30, 7
      %p254 = por %p252, %p253
      %p256 = scmp.ne.s32.totalorder %s241, %s255
      %p257 = scmp.eq.s32.totalorder %s30, 0
      %p258 = por %p256, %p257
      %s260 = sadd.s32 %s259, 1
      %p263 = scmp.eq.s32.totalorder %s24, 7
      %p264 = scmp.ne.s32.totalorder %s259, %s261
      %p265 = scmp.eq.s32.totalorder %s24, 0
      %p266 = por %p264, %p265
      %p267 = scmp.ne.s32.totalorder %s259, %s261
      %p268 = scmp.eq.s32.totalorder %s29, 7
      %p269 = por %p267, %p268
      %p270 = scmp.ne.s32.totalorder %s261, %s262
      %p271 = scmp.eq.s32.totalorder %s29, 0
      %p272 = por %p270, %p271
      %p273 = scmp.ne.s32.totalorder %s261, %s262
      %p274 = scmp.eq.s32.totalorder %s30, 7
      %p275 = por %p273, %p274
      %p277 = scmp.ne.s32.totalorder %s262, %s276
      %p278 = scmp.eq.s32.totalorder %s30, 0
      %p279 = por %p277, %p278
      %s280 = ssub.s32 %s32, %s39
      %p281 = scmp.eq.s32.totalorder %s280, 0
      %s283 = sadd.s32 %s282, 1
      %s284 = scalar_select %p281, %s282, %s283
      %p287 = pneg %p281
      %p288 = scmp.eq.s32.totalorder %s24, 7
      %p289 = por %p287, %p288
      %p290 = scmp.ne.s32.totalorder %s282, %s285
      %p291 = scmp.eq.s32.totalorder %s24, 0
      %p292 = por %p290, %p291
      %p293 = scmp.ne.s32.totalorder %s282, %s285
      %p294 = scmp.eq.s32.totalorder %s29, 7
      %p295 = por %p293, %p294
      %p296 = scmp.ne.s32.totalorder %s285, %s286
      %p297 = scmp.eq.s32.totalorder %s29, 0
      %p298 = por %p296, %p297
      %p299 = scmp.ne.s32.totalorder %s285, %s286
      %p300 = scmp.eq.s32.totalorder %s30, 7
      %p301 = por %p299, %p300
      %p303 = scmp.ne.s32.totalorder %s286, %s302
      %p304 = scmp.eq.s32.totalorder %s30, 0
      %p305 = por %p303, %p304
      %s306 = ssub.s32 %s32, %s39
      %p307 = scmp.eq.s32.totalorder %s306, 0
      %s309 = sadd.s32 %s308, 1
      %s310 = scalar_select %p307, %s308, %s309
      %p313 = pneg %p307
      %p314 = scmp.eq.s32.totalorder %s24, 7
      %p315 = por %p313, %p314
      %p316 = scmp.ne.s32.totalorder %s308, %s311
      %p317 = scmp.eq.s32.totalorder %s24, 0
      %p318 = por %p316, %p317
      %p319 = scmp.ne.s32.totalorder %s308, %s311
      %p320 = scmp.eq.s32.totalorder %s29, 7
      %p321 = por %p319, %p320
      %p322 = scmp.ne.s32.totalorder %s311, %s312
      %p323 = scmp.eq.s32.totalorder %s29, 0
      %p324 = por %p322, %p323
      %p325 = scmp.ne.s32.totalorder %s311, %s312
      %p326 = scmp.eq.s32.totalorder %s30, 7
      %p327 = por %p325, %p326
      %p329 = scmp.ne.s32.totalorder %s312, %s328
      %p330 = scmp.eq.s32.totalorder %s30, 0
      %p331 = por %p329, %p330
      %s332 = ssub.s32 %s32, %s39
      %p333 = scmp.eq.s32.totalorder %s332, 0
      %s335 = sadd.s32 %s334, 1
      %s336 = scalar_select %p333, %s334, %s335
      %p339 = pneg %p333
      %p340 = scmp.eq.s32.totalorder %s24, 7
      %p341 = por %p339, %p340
      %p342 = scmp.ne.s32.totalorder %s334, %s337
      %p343 = scmp.eq.s32.totalorder %s24, 0
      %p344 = por %p342, %p343
      %p345 = scmp.ne.s32.totalorder %s334, %s337
      %p346 = scmp.eq.s32.totalorder %s29, 7
      %p347 = por %p345, %p346
      %p348 = scmp.ne.s32.totalorder %s337, %s338
      %p349 = scmp.eq.s32.totalorder %s29, 0
      %p350 = por %p348, %p349
      %p351 = scmp.ne.s32.totalorder %s337, %s338
      %p352 = scmp.eq.s32.totalorder %s30, 7
      %p353 = por %p351, %p352
      %p355 = scmp.ne.s32.totalorder %s338, %s354
      %p356 = scmp.eq.s32.totalorder %s30, 0
      %p357 = por %p355, %p356
      %s358 = ssub.s32 %s32, %s39
      %p359 = scmp.eq.s32.totalorder %s358, 0
      %s361 = sadd.s32 %s360, 1
      %s362 = scalar_select %p359, %s360, %s361
      %p365 = pneg %p359
      %p366 = scmp.eq.s32.totalorder %s24, 7
      %p367 = por %p365, %p366
      %p368 = scmp.ne.s32.totalorder %s360, %s363
      %p369 = scmp.eq.s32.totalorder %s24, 0
      %p370 = por %p368, %p369
      %p371 = scmp.ne.s32.totalorder %s360, %s363
      %p372 = scmp.eq.s32.totalorder %s29, 7
      %p373 = por %p371, %p372
      %p374 = scmp.ne.s32.totalorder %s363, %s364
      %p375 = scmp.eq.s32.totalorder %s29, 0
      %p376 = por %p374, %p375
      %p377 = scmp.ne.s32.totalorder %s363, %s364
      %p378 = scmp.eq.s32.totalorder %s30, 7
      %p379 = por %p377, %p378
      %p381 = scmp.ne.s32.totalorder %s364, %s380
      %p382 = scmp.eq.s32.totalorder %s30, 0
      %p383 = por %p381, %p382
      %s384 = ssub.s32 %s31, %s43
      %p385 = scmp.eq.s32.totalorder %s384, 0
      %s387 = sadd.s32 %s386, 1
      %s388 = scalar_select %p385, %s386, %s387
      %p391 = pneg %p385
      %p392 = scmp.eq.s32.totalorder %s24, 7
      %p393 = por %p391, %p392
      %p394 = scmp.ne.s32.totalorder %s386, %s389
      %p395 = scmp.eq.s32.totalorder %s24, 0
      %p396 = por %p394, %p395
      %p397 = scmp.ne.s32.totalorder %s386, %s389
      %p398 = scmp.eq.s32.totalorder %s29, 7
      %p399 = por %p397, %p398
      %p400 = scmp.ne.s32.totalorder %s389, %s390
      %p401 = scmp.eq.s32.totalorder %s29, 0
      %p402 = por %p400, %p401
      %p403 = scmp.ne.s32.totalorder %s389, %s390
      %p404 = scmp.eq.s32.totalorder %s30, 7
      %p405 = por %p403, %p404
      %p407 = scmp.ne.s32.totalorder %s390, %s406
      %p408 = scmp.eq.s32.totalorder %s30, 0
      %p409 = por %p407, %p408
      %p410 = scmp.le.s32.totalorder 1, %s24
      %p411 = scmp.lt.s32.totalorder %s24, 9
      %p412 = pnand %p410, %p411
      %p413 = pneg %p412
      // Predicated region
      $region9: #{tpu_custom_call.1} parent=5 // pred_check
        _
      $region10: #{tpu_custom_call.1} parent=5 // pred_check_branch
        %415 = sbr.rel (%p412) target = $region12
      $region11: #{tpu_custom_call.1} parent=5 // pred_region
        %s416 = ssub.s32 %s24, 1
        // Predicated region
        $region13: #{tpu_custom_call.1} parent=11 // pred_check
          %p417 = pneg %p83
        $region14: #{tpu_custom_call.1} parent=11 // pred_check_branch
          %419 = sbr.rel (%p417) target = $region16
        $region15: #{tpu_custom_call.1} parent=11 // pred_region
          _
        $region16: #{tpu_custom_call.1} parent=11 // pred_fallthru
          _
        // Predicated region
        $region17: #{tpu_custom_call.1} parent=11 // pred_check
          %p420 = pneg %p104
        $region18: #{tpu_custom_call.1} parent=11 // pred_check_branch
          %422 = sbr.rel (%p420) target = $region20
        $region19: #{tpu_custom_call.1} parent=11 // pred_region
          _
        $region20: #{tpu_custom_call.1} parent=11 // pred_fallthru
          _
        // Predicated region
        $region21: #{tpu_custom_call.1} parent=11 // pred_check
          %p423 = pneg %p125
        $region22: #{tpu_custom_call.1} parent=11 // pred_check_branch
          %425 = sbr.rel (%p423) target = $region24
        $region23: #{tpu_custom_call.1} parent=11 // pred_region
          _
        $region24: #{tpu_custom_call.1} parent=11 // pred_fallthru
          _
        // Predicated region
        $region25: #{tpu_custom_call.1} parent=11 // pred_check
          %p426 = pneg %p146
        $region26: #{tpu_custom_call.1} parent=11 // pred_check_branch
          %428 = sbr.rel (%p426) target = $region28
        $region27: #{tpu_custom_call.1} parent=11 // pred_region
          _
        $region28: #{tpu_custom_call.1} parent=11 // pred_fallthru
          _
        // Predicated region
        $region29: #{tpu_custom_call.1} parent=11 // pred_check
          %p429 = pneg %p167
        $region30: #{tpu_custom_call.1} parent=11 // pred_check_branch
          %431 = sbr.rel (%p429) target = $region32
        $region31: #{tpu_custom_call.1} parent=11 // pred_region
          _
        $region32: #{tpu_custom_call.1} parent=11 // pred_fallthru
          _
        // Predicated region
        $region33: #{tpu_custom_call.1} parent=11 // pred_check
          %p432 = pneg %p188
        $region34: #{tpu_custom_call.1} parent=11 // pred_check_branch
          %434 = sbr.rel (%p432) target = $region36
        $region35: #{tpu_custom_call.1} parent=11 // pred_region
          _
        $region36: #{tpu_custom_call.1} parent=11 // pred_fallthru
          _
        // Predicated region
        $region37: #{tpu_custom_call.1} parent=11 // pred_check
          %p435 = pneg %p209
        $region38: #{tpu_custom_call.1} parent=11 // pred_check_branch
          %437 = sbr.rel (%p435) target = $region40
        $region39: #{tpu_custom_call.1} parent=11 // pred_region
          _
        $region40: #{tpu_custom_call.1} parent=11 // pred_fallthru
          _
        // Predicated region
        $region41: #{tpu_custom_call.1} parent=11 // pred_check
          %p438 = pneg %p230
        $region42: #{tpu_custom_call.1} parent=11 // pred_check_branch
          %440 = sbr.rel (%p438) target = $region44
        $region43: #{tpu_custom_call.1} parent=11 // pred_region
          _
        $region44: #{tpu_custom_call.1} parent=11 // pred_fallthru
          _
        // Predicated region
        $region45: #{tpu_custom_call.1} parent=11 // pred_check
          %p441 = pneg %p251
        $region46: #{tpu_custom_call.1} parent=11 // pred_check_branch
          %443 = sbr.rel (%p441) target = $region48
        $region47: #{tpu_custom_call.1} parent=11 // pred_region
          _
        $region48: #{tpu_custom_call.1} parent=11 // pred_fallthru
          _
        // Predicated region
        $region49: #{tpu_custom_call.1} parent=11 // pred_check
          %p444 = pneg %p272
        $region50: #{tpu_custom_call.1} parent=11 // pred_check_branch
          %446 = sbr.rel (%p444) target = $region52
        $region51: #{tpu_custom_call.1} parent=11 // pred_region
          _
        $region52: #{tpu_custom_call.1} parent=11 // pred_fallthru
          _
      $region12: #{tpu_custom_call.1} parent=5 // pred_fallthru
        _
      %p447 = scmp.lt.s32.totalorder %s24, 8
      // Predicated region
      $region53: #{tpu_custom_call.1} parent=5 // pred_check
        %p448 = pneg %p447
      $region54: #{tpu_custom_call.1} parent=5 // pred_check_branch
        %450 = sbr.rel (%p448) target = $region56
      $region55: #{tpu_custom_call.1} parent=5 // pred_region
        // Predicated region
        $region57: #{tpu_custom_call.1} parent=55 // pred_check
          %p451 = pneg %p56
        $region58: #{tpu_custom_call.1} parent=55 // pred_check_branch
          %453 = sbr.rel (%p451) target = $region60
        $region59: #{tpu_custom_call.1} parent=55 // pred_region
          %p454 = scmp.lt.s32.totalorder %s31, 1
          %s455 = scalar_select %p454, %s31, 1
          %s456 = smul.addr %s455, 8
          %s457 = scalar_lea.vmem %s0, %s456
        $region60: #{tpu_custom_call.1} parent=55 // pred_fallthru
          _
        // Predicated region
        $region61: #{tpu_custom_call.1} parent=55 // pred_check
          %p458 = pneg %p292
        $region62: #{tpu_custom_call.1} parent=55 // pred_check_branch
          %460 = sbr.rel (%p458) target = $region64
        $region63: #{tpu_custom_call.1} parent=55 // pred_region
          %p461 = scmp.lt.s32.totalorder %s32, 3
          %s462 = scalar_select %p461, %s32, 3
          %s463 = smul.addr %s462, 4
          %s464 = smul.addr %s463, 4
          %s465 = scalar_lea.vmem %s11, %s464
        $region64: #{tpu_custom_call.1} parent=55 // pred_fallthru
          _
        // Predicated region
        $region65: #{tpu_custom_call.1} parent=55 // pred_check
          %p466 = pneg %p318
        $region66: #{tpu_custom_call.1} parent=55 // pred_check_branch
          %468 = sbr.rel (%p466) target = $region68
        $region67: #{tpu_custom_call.1} parent=55 // pred_region
          %p469 = scmp.lt.s32.totalorder %s32, 3
          %s470 = scalar_select %p469, %s32, 3
          %s471 = scalar_lea.vmem %s12, %s470
        $region68: #{tpu_custom_call.1} parent=55 // pred_fallthru
          _
        // Predicated region
        $region69: #{tpu_custom_call.1} parent=55 // pred_check
          %p472 = pneg %p344
        $region70: #{tpu_custom_call.1} parent=55 // pred_check_branch
          %474 = sbr.rel (%p472) target = $region72
        $region71: #{tpu_custom_call.1} parent=55 // pred_region
          %p475 = scmp.lt.s32.totalorder %s32, 3
          %s476 = scalar_select %p475, %s32, 3
          %s477 = smul.addr %s476, 8
          %s478 = smul.addr %s477, 4
          %s479 = scalar_lea.vmem %s13, %s478
        $region72: #{tpu_custom_call.1} parent=55 // pred_fallthru
          _
        // Predicated region
        $region73: #{tpu_custom_call.1} parent=55 // pred_check
          %p480 = pneg %p370
        $region74: #{tpu_custom_call.1} parent=55 // pred_check_branch
          %482 = sbr.rel (%p480) target = $region76
        $region75: #{tpu_custom_call.1} parent=55 // pred_region
          %p483 = scmp.lt.s32.totalorder %s32, 3
          %s484 = scalar_select %p483, %s32, 3
          %s485 = scalar_lea.vmem %s14, %s484
        $region76: #{tpu_custom_call.1} parent=55 // pred_fallthru
          _
      $region56: #{tpu_custom_call.1} parent=5 // pred_fallthru
        _
      %p486 = scmp.le.s32.totalorder 1, %s24
      %p487 = scmp.lt.s32.totalorder %s24, 9
      %p488 = pnand %p486, %p487
      %p489 = pneg %p488
      // Predicated region
      $region77: #{tpu_custom_call.1} parent=5 // pred_check
        _
      $region78: #{tpu_custom_call.1} parent=5 // pred_check_branch
        %491 = sbr.rel (%p488) target = $region80
      $region79: #{tpu_custom_call.1} parent=5 // pred_region
        %s492 = ssub.s32 %s24, 1
        %p493 = scmp.lt.s32.totalorder %s33, 1
        %s494 = scalar_select %p493, %s33, 1
        %s495 = smul.addr %s494, 8
        %s496 = scalar_lea.vmem %s0, %s495
        %p497 = pneg %p62
        %p498 = pneg %p59
        %p499 = pneg %p83
        %p500 = pneg %p80
        %p501 = pneg %p104
        %p502 = pneg %p101
        %p503 = pneg %p125
        %p504 = pneg %p122
        %p505 = pneg %p146
        %p506 = pneg %p143
        %p507 = pneg %p167
        %p508 = pneg %p164
        %p509 = pneg %p188
        %p510 = pneg %p185
        %p511 = pneg %p209
        %p512 = pneg %p206
        %p513 = pneg %p230
        %p514 = pneg %p227
        %p515 = pneg %p251
        %p516 = pneg %p248
        %p517 = pneg %p272
        %p518 = pneg %p269
        %p519 = scmp.lt.s32.totalorder %s34, 3
        %s520 = scalar_select %p519, %s34, 3
        %s521 = smul.addr %s520, 4
        %s522 = smul.addr %s521, 4
        %s523 = scalar_lea.vmem %s11, %s522
        %p524 = pneg %p298
        %p525 = pneg %p295
        %p526 = scmp.lt.s32.totalorder %s34, 3
        %s527 = scalar_select %p526, %s34, 3
        %s528 = scalar_lea.vmem %s12, %s527
        %p529 = pneg %p324
        %p530 = pneg %p321
        %p531 = scmp.lt.s32.totalorder %s34, 3
        %s532 = scalar_select %p531, %s34, 3
        %s533 = smul.addr %s532, 8
        %s534 = smul.addr %s533, 4
        %s535 = scalar_lea.vmem %s13, %s534
        %p536 = pneg %p350
        %p537 = pneg %p347
        %p538 = scmp.lt.s32.totalorder %s34, 3
        %s539 = scalar_select %p538, %s34, 3
        %s540 = scalar_lea.vmem %s14, %s539
        %p541 = pneg %p376
        %p542 = pneg %p373
        %p543 = pneg %p402
        %p544 = pneg %p399
        %s545 = sand.u32 %s389, 1
        %s546 = scalar_lea.sflag [#allocation6], %s545
        %s547 = sand.u32 %s389, 1
        %s548 = smul.addr %s547, 8
        %s549 = scalar_lea.vmem [#allocation5], %s548
        %p550 = scmp.lt.s32.totalorder %s33, 1
        %s551 = scalar_select %p550, %s33, 1
        %s552 = smul.addr %s551, 8
        %s553 = scalar_lea.vmem %s0, %s552
        %p554 = scmp.lt.s32.totalorder %s34, 3
        %s555 = scalar_select %p554, %s34, 3
        %s556 = smul.addr %s555, 4
        %s557 = smul.addr %s556, 4
        %s558 = scalar_lea.vmem %s11, %s557
        %p559 = scmp.lt.s32.totalorder %s34, 3
        %s560 = scalar_select %p559, %s34, 3
        %s561 = scalar_lea.vmem %s12, %s560
        %p562 = scmp.lt.s32.totalorder %s34, 3
        %s563 = scalar_select %p562, %s34, 3
        %s564 = smul.addr %s563, 8
        %s565 = smul.addr %s564, 4
        %s566 = scalar_lea.vmem %s13, %s565
        %p567 = scmp.lt.s32.totalorder %s34, 3
        %s568 = scalar_select %p567, %s34, 3
        %s569 = scalar_lea.vmem %s14, %s568
        %p571 = scmp.eq.s32.totalorder %s34, 0
        // Predicated region
        $region81: #{tpu_custom_call.1} parent=79 // pred_check
          %p572 = pneg %p571
        $region82: #{tpu_custom_call.1} parent=79 // pred_check_branch
          %574 = sbr.rel (%p572) target = $region84
        $region83: #{tpu_custom_call.1} parent=79 // pred_region
          %v575 = vld [vmem:[%s553] sm:$0xff]
          %v576 = vld [vmem:[%s1] sm:$0x1]
          %v577 = vld [vmem:[%s2] sm:$0x1]
          %vm578 = vcmask 261120
          %v579 = vsel %vm578, %v575, 0.0
          %580 = vadd.xlane.f32.xlu0 %v579
          %v581 = vpop.xlane.xlu0 %580
          %v582 = vrcp.pop 32.0
          %v583 = vmul.f32 %v581, %v582
          %v584 = vsub.f32 %v575, %v583
          %v585 = vmul.f32 %v584, %v584
          %v586 = vsel %vm578, %v585, 0.0
          %587 = vadd.xlane.f32.xlu0 %v586
          %v588 = vpop.xlane.xlu0 %587
          %v589 = vmul.f32 %v588, %v582
          %v590 = vadd.f32 %v589, 1e-05
          %v591 = vrsqrt.pop %v590
          %v592 = vmul.f32 %v584, %v591
          %v594 = vlaneseq
          %v595 = vshrl.u32 %v594, 7
          %v596 = vsub.s32 0, %v595
          %v597 = vrot.slane %v576, %v596
          %v599 = vmul.f32 %v592, %v597
          %v601 = vlaneseq
          %v602 = vshrl.u32 %v601, 7
          %v603 = vsub.s32 0, %v602
          %v604 = vrot.slane %v577, %v603
          %v606 = vadd.f32 %v599, %v604
          %v607 = vpack.c.bf16 %v606, %v606
          %v608 = vld [vmem:[%s3] sm:$0xf]
          %v609 = vld [vmem:[%s3 + $0x4] sm:$0xf]
          %v610 = vld [vmem:[%s3 + $0x8] sm:$0xf]
          %v611 = vld [vmem:[%s3 + $0xc] sm:$0xf]
          %v612 = vld [vmem:[%s4] sm:$0x1]
          %v614 = vlaneseq
          %v615 = vshrl.u32 %v614, 7
          %v616 = vsub.s32 0, %v615
          %v617 = vrot.slane %v612, %v616
          %v623 = vunpack.c.l.b16 %v608
          %v624 = vunpack.c.l.b16 %v609
          %v625 = vunpack.c.l.b16 %v610
          %v626 = vunpack.c.l.b16 %v611
          %v627 = vpack.c.b16 %v624, %v623
          %v628 = vpack.c.b16 %v626, %v625
          %v632 = vsel %vm578, %v607, 0
          %634 = vmatprep.subr.bf16.mxu0 0
          %635 = vmatpush1.bf16.msra.mxu0 %v627
          %636 = vmatprep.subr.bf16.mxu0 0
          %637 = vmatpush1.bf16.msra.mxu0 %v628
          %638 = vmatprep.subr.bf16.mxu0 0
          %639 = vmatpush1.bf16.msra.mxu0 0
          %640 = vmatprep.subr.bf16.mxu0 0
          %641 = vmatpush1.bf16.msra.mxu0 0
          %642 = vmatprep.subr.bf16.mxu0 0
          %643 = vmatpush1.bf16.msra.mxu0 0
          %644 = vmatprep.subr.bf16.mxu0 0
          %645 = vmatpush1.bf16.msra.mxu0 0
          %646 = vmatprep.subr.bf16.mxu0 0
          %647 = vmatpush1.bf16.msra.mxu0 0
          %648 = vmatprep.subr.bf16.mxu0 0
          %649 = vmatpush1.bf16.msra.mxu0 0
          %650 = vmatprep.subr.bf16.mxu0 0
          %651 = vmatpush1.bf16.msra.mxu0 0
          %652 = vmatprep.subr.bf16.mxu0 0
          %653 = vmatpush1.bf16.msra.mxu0 0
          %654 = vmatprep.subr.bf16.mxu0 0
          %655 = vmatpush1.bf16.msra.mxu0 0
          %656 = vmatprep.subr.bf16.mxu0 0
          %657 = vmatpush1.bf16.msra.mxu0 0
          %658 = vmatprep.subr.bf16.mxu0 0
          %659 = vmatpush1.bf16.msra.mxu0 0
          %660 = vmatprep.subr.bf16.mxu0 0
          %661 = vmatpush1.bf16.msra.mxu0 0
          %662 = vmatprep.subr.bf16.mxu0 0
          %663 = vmatpush1.bf16.msra.mxu0 0
          %664 = vmatprep.subr.bf16.mxu0 0
          %665 = vmatpush1.bf16.msra.mxu0 0
          %666 = vmatprep.mubr.bf16.mxu0 0
          %667 = vmatmul.mubr.bf16.gmra.mrb[0].mxu0 %v632
          %v668 = vpop.f32.mrb[0].mxu0
          %v669 = vadd.f32 %v617, %v668
          %v670 = vpop.f32.mrb[0].mxu0
          %v671 = vpop.f32.mrb[0].mxu0
          %v672 = vpop.f32.mrb[0].mxu0
          %673 = vdwg.mxu0
          %v674 = vmul.f32 %v669, 0.35355338
          %v675 = vpack.c.bf16 %v674, %v674
          %v676 = vpack.c.bf16 %v669, %v669
          %678 = vrot.lane.b32.xlu0 %v676, 96
          %v679 = vpop.permute.xlu0 %678
          %vm680 = vcmask 64512
          %v682 = vsel %vm680, %v675, 0
          %v685 = vsel %vm680, %v679, 0
          %687 = vmatprep.subr.bf16.mxu0 0
          %688 = vmatpush1.bf16.xpose.msra.mxu0 %v685
          %689 = vmatprep.subr.bf16.mxu0 0
          %690 = vmatpush1.bf16.xpose.msra.mxu0 0
          %691 = vmatprep.subr.bf16.mxu0 0
          %692 = vmatpush1.bf16.xpose.msra.mxu0 0
          %693 = vmatprep.subr.bf16.mxu0 0
          %694 = vmatpush1.bf16.xpose.msra.mxu0 0
          %695 = vmatprep.subr.bf16.mxu0 0
          %696 = vmatpush1.bf16.xpose.msra.mxu0 0
          %697 = vmatprep.subr.bf16.mxu0 0
          %698 = vmatpush1.bf16.xpose.msra.mxu0 0
          %699 = vmatprep.subr.bf16.mxu0 0
          %700 = vmatpush1.bf16.xpose.msra.mxu0 0
          %701 = vmatprep.subr.bf16.mxu0 0
          %702 = vmatpush1.bf16.xpose.msra.mxu0 0
          %703 = vmatprep.subr.bf16.mxu0 0
          %704 = vmatpush1.bf16.xpose.msra.mxu0 0
          %705 = vmatprep.subr.bf16.mxu0 0
          %706 = vmatpush1.bf16.xpose.msra.mxu0 0
          %707 = vmatprep.subr.bf16.mxu0 0
          %708 = vmatpush1.bf16.xpose.msra.mxu0 0
          %709 = vmatprep.subr.bf16.mxu0 0
          %710 = vmatpush1.bf16.xpose.msra.mxu0 0
          %711 = vmatprep.subr.bf16.mxu0 0
          %712 = vmatpush1.bf16.xpose.msra.mxu0 0
          %713 = vmatprep.subr.bf16.mxu0 0
          %714 = vmatpush1.bf16.xpose.msra.mxu0 0
          %715 = vmatprep.subr.bf16.mxu0 0
          %716 = vmatpush1.bf16.xpose.msra.mxu0 0
          %717 = vmatprep.subr.bf16.mxu0 0
          %718 = vmatpush1.bf16.xpose.msra.mxu0 0
          %719 = vmatprep.mubr.bf16.mxu0 0
          %720 = vmatmul.mubr.bf16.gmra.mrb[0].mxu0 %v682
          %v721 = vpop.f32.mrb[0].mxu0
          %v722 = vadd.f32 0.0, %v721
          %v723 = vpop.f32.mrb[0].mxu0
          %v724 = vpop.f32.mrb[0].mxu0
          %v725 = vpop.f32.mrb[0].mxu0
          %726 = vdwg.mxu0
          %v727 = vsel %vm680, %v722, -inf
          %728 = vmax.xlane.f32.xlu0 %v727
          %v729 = vpop.xlane.xlu0 %728
          %v730 = vsub.f32 %v722, %v729
          %v731 = vmul.f32 %v730, 1.442695
          %v732 = vpow.pop %v731
          %v733 = vsel %vm680, %v732, 0.0
          %734 = vadd.xlane.f32.xlu0 %v733
          %v735 = vpop.xlane.xlu0 %734
          %v736 = vrcp.pop %v735
          %v737 = vmul.f32 %v732, %v736
          %v738 = vpack.c.bf16 %v737, %v737
          %739 = vrot.lane.b32.xlu0 %v676, 64
          %v740 = vpop.permute.xlu0 %739
          %v742 = vsel %vm680, %v738, 0
          %vm744 = vcmask 1043456
          %v746 = vsel %vm744, %v740, 0
          %748 = vmatprep.subr.bf16.mxu0 0
          %749 = vmatpush1.bf16.msra.mxu0 %v746
          %750 = vmatprep.subr.bf16.mxu0 0
          %751 = vmatpush1.bf16.msra.mxu0 0
          %752 = vmatprep.subr.bf16.mxu0 0
          %753 = vmatpush1.bf16.msra.mxu0 0
          %754 = vmatprep.subr.bf16.mxu0 0
          %755 = vmatpush1.bf16.msra.mxu0 0
          %756 = vmatprep.subr.bf16.mxu0 0
          %757 = vmatpush1.bf16.msra.mxu0 0
          %758 = vmatprep.subr.bf16.mxu0 0
          %759 = vmatpush1.bf16.msra.mxu0 0
          %760 = vmatprep.subr.bf16.mxu0 0
          %761 = vmatpush1.bf16.msra.mxu0 0
          %762 = vmatprep.subr.bf16.mxu0 0
          %763 = vmatpush1.bf16.msra.mxu0 0
          %764 = vmatprep.subr.bf16.mxu0 0
          %765 = vmatpush1.bf16.msra.mxu0 0
          %766 = vmatprep.subr.bf16.mxu0 0
          %767 = vmatpush1.bf16.msra.mxu0 0
          %768 = vmatprep.subr.bf16.mxu0 0
          %769 = vmatpush1.bf16.msra.mxu0 0
          %770 = vmatprep.subr.bf16.mxu0 0
          %771 = vmatpush1.bf16.msra.mxu0 0
          %772 = vmatprep.subr.bf16.mxu0 0
          %773 = vmatpush1.bf16.msra.mxu0 0
          %774 = vmatprep.subr.bf16.mxu0 0
          %775 = vmatpush1.bf16.msra.mxu0 0
          %776 = vmatprep.subr.bf16.mxu0 0
          %777 = vmatpush1.bf16.msra.mxu0 0
          %778 = vmatprep.subr.bf16.mxu0 0
          %779 = vmatpush1.bf16.msra.mxu0 0
          %780 = vmatprep.mubr.bf16.mxu0 0
          %781 = vmatmul.mubr.bf16.gmra.mrb[0].mxu0 %v742
          %v782 = vpop.f32.mrb[0].mxu0
          %v783 = vadd.f32 0.0, %v782
          %v784 = vpop.f32.mrb[0].mxu0
          %v785 = vpop.f32.mrb[0].mxu0
          %v786 = vpop.f32.mrb[0].mxu0
          %787 = vdwg.mxu0
          %v788 = vpack.c.bf16 %v783, %v783
          %v789 = vld [vmem:[%s5] sm:$0xf]
          %791 = vrot.lane.b32.xlu0 %v675, 120
          %v792 = vpop.permute.xlu0 %791
          %793 = vrot.lane.b32.xlu0 %v676, 88
          %v794 = vpop.permute.xlu0 %793
          %v796 = vsel %vm680, %v792, 0
          %v799 = vsel %vm680, %v794, 0
          %801 = vmatprep.subr.bf16.mxu0 0
          %802 = vmatpush1.bf16.xpose.msra.mxu0 %v799
          %803 = vmatprep.subr.bf16.mxu0 0
          %804 = vmatpush1.bf16.xpose.msra.mxu0 0
          %805 = vmatprep.subr.bf16.mxu0 0
          %806 = vmatpush1.bf16.xpose.msra.mxu0 0
          %807 = vmatprep.subr.bf16.mxu0 0
          %808 = vmatpush1.bf16.xpose.msra.mxu0 0
          %809 = vmatprep.subr.bf16.mxu0 0
          %810 = vmatpush1.bf16.xpose.msra.mxu0 0
          %811 = vmatprep.subr.bf16.mxu0 0
          %812 = vmatpush1.bf16.xpose.msra.mxu0 0
          %813 = vmatprep.subr.bf16.mxu0 0
          %814 = vmatpush1.bf16.xpose.msra.mxu0 0
          %815 = vmatprep.subr.bf16.mxu0 0
          %816 = vmatpush1.bf16.xpose.msra.mxu0 0
          %817 = vmatprep.subr.bf16.mxu0 0
          %818 = vmatpush1.bf16.xpose.msra.mxu0 0
          %819 = vmatprep.subr.bf16.mxu0 0
          %820 = vmatpush1.bf16.xpose.msra.mxu0 0
          %821 = vmatprep.subr.bf16.mxu0 0
          %822 = vmatpush1.bf16.xpose.msra.mxu0 0
          %823 = vmatprep.subr.bf16.mxu0 0
          %824 = vmatpush1.bf16.xpose.msra.mxu0 0
          %825 = vmatprep.subr.bf16.mxu0 0
          %826 = vmatpush1.bf16.xpose.msra.mxu0 0
          %827 = vmatprep.subr.bf16.mxu0 0
          %828 = vmatpush1.bf16.xpose.msra.mxu0 0
          %829 = vmatprep.subr.bf16.mxu0 0
          %830 = vmatpush1.bf16.xpose.msra.mxu0 0
          %831 = vmatprep.subr.bf16.mxu0 0
          %832 = vmatpush1.bf16.xpose.msra.mxu0 0
          %833 = vmatprep.mubr.bf16.mxu0 0
          %834 = vmatmul.mubr.bf16.gmra.mrb[0].mxu0 %v796
          %v835 = vpop.f32.mrb[0].mxu0
          %v836 = vadd.f32 0.0, %v835
          %v837 = vpop.f32.mrb[0].mxu0
          %v838 = vpop.f32.mrb[0].mxu0
          %v839 = vpop.f32.mrb[0].mxu0
          %840 = vdwg.mxu0
          %v841 = vsel %vm680, %v836, -inf
          %842 = vmax.xlane.f32.xlu0 %v841
          %v843 = vpop.xlane.xlu0 %842
          %v844 = vsub.f32 %v836, %v843
          %v845 = vmul.f32 %v844, 1.442695
          %v846 = vpow.pop %v845
          %v847 = vsel %vm680, %v846, 0.0
          %848 = vadd.xlane.f32.xlu0 %v847
          %v849 = vpop.xlane.xlu0 %848
          %v850 = vrcp.pop %v849
          %v851 = vmul.f32 %v846, %v850
          %v852 = vpack.c.bf16 %v851, %v851
          %853 = vrot.lane.b32.xlu0 %v676, 56
          %v854 = vpop.permute.xlu0 %853
          %v856 = vsel %vm680, %v852, 0
          %v859 = vsel %vm744, %v854, 0
          %861 = vmatprep.subr.bf16.mxu0 0
          %862 = vmatpush1.bf16.msra.mxu0 %v859
          %863 = vmatprep.subr.bf16.mxu0 0
          %864 = vmatpush1.bf16.msra.mxu0 0
          %865 = vmatprep.subr.bf16.mxu0 0
          %866 = vmatpush1.bf16.msra.mxu0 0
          %867 = vmatprep.subr.bf16.mxu0 0
          %868 = vmatpush1.bf16.msra.mxu0 0
          %869 = vmatprep.subr.bf16.mxu0 0
          %870 = vmatpush1.bf16.msra.mxu0 0
          %871 = vmatprep.subr.bf16.mxu0 0
          %872 = vmatpush1.bf16.msra.mxu0 0
          %873 = vmatprep.subr.bf16.mxu0 0
          %874 = vmatpush1.bf16.msra.mxu0 0
          %875 = vmatprep.subr.bf16.mxu0 0
          %876 = vmatpush1.bf16.msra.mxu0 0
          %877 = vmatprep.subr.bf16.mxu0 0
          %878 = vmatpush1.bf16.msra.mxu0 0
          %879 = vmatprep.subr.bf16.mxu0 0
          %880 = vmatpush1.bf16.msra.mxu0 0
          %881 = vmatprep.subr.bf16.mxu0 0
          %882 = vmatpush1.bf16.msra.mxu0 0
          %883 = vmatprep.subr.bf16.mxu0 0
          %884 = vmatpush1.bf16.msra.mxu0 0
          %885 = vmatprep.subr.bf16.mxu0 0
          %886 = vmatpush1.bf16.msra.mxu0 0
          %887 = vmatprep.subr.bf16.mxu0 0
          %888 = vmatpush1.bf16.msra.mxu0 0
          %889 = vmatprep.subr.bf16.mxu0 0
          %890 = vmatpush1.bf16.msra.mxu0 0
          %891 = vmatprep.subr.bf16.mxu0 0
          %892 = vmatpush1.bf16.msra.mxu0 0
          %893 = vmatprep.mubr.bf16.mxu0 0
          %894 = vmatmul.mubr.bf16.gmra.mrb[0].mxu0 %v856
          %v895 = vpop.f32.mrb[0].mxu0
          %v896 = vadd.f32 0.0, %v895
          %v897 = vpop.f32.mrb[0].mxu0
          %v898 = vpop.f32.mrb[0].mxu0
          %v899 = vpop.f32.mrb[0].mxu0
          %900 = vdwg.mxu0
          %v901 = vpack.c.bf16 %v896, %v896
          %s902 = scalar_lea.vmem %s5, 4
          %v903 = vld [vmem:[%s902] sm:$0xf]
          %v905 = vsel %vm680, %v901, 0
          %v908 = vsel %vm744, %v903, 0
          %910 = vmatprep.subr.bf16.mxu0 0
          %911 = vmatpush1.bf16.msra.mxu0 %v908
          %912 = vmatprep.subr.bf16.mxu0 0
          %913 = vmatpush1.bf16.msra.mxu0 0
          %914 = vmatprep.subr.bf16.mxu0 0
          %915 = vmatpush1.bf16.msra.mxu0 0
          %916 = vmatprep.subr.bf16.mxu0 0
          %917 = vmatpush1.bf16.msra.mxu0 0
          %918 = vmatprep.subr.bf16.mxu0 0
          %919 = vmatpush1.bf16.msra.mxu0 0
          %920 = vmatprep.subr.bf16.mxu0 0
          %921 = vmatpush1.bf16.msra.mxu0 0
          %922 = vmatprep.subr.bf16.mxu0 0
          %923 = vmatpush1.bf16.msra.mxu0 0
          %924 = vmatprep.subr.bf16.mxu0 0
          %925 = vmatpush1.bf16.msra.mxu0 0
          %926 = vmatprep.subr.bf16.mxu0 0
          %927 = vmatpush1.bf16.msra.mxu0 0
          %928 = vmatprep.subr.bf16.mxu0 0
          %929 = vmatpush1.bf16.msra.mxu0 0
          %930 = vmatprep.subr.bf16.mxu0 0
          %931 = vmatpush1.bf16.msra.mxu0 0
          %932 = vmatprep.subr.bf16.mxu0 0
          %933 = vmatpush1.bf16.msra.mxu0 0
          %934 = vmatprep.subr.bf16.mxu0 0
          %935 = vmatpush1.bf16.msra.mxu0 0
          %936 = vmatprep.subr.bf16.mxu0 0
          %937 = vmatpush1.bf16.msra.mxu0 0
          %938 = vmatprep.subr.bf16.mxu0 0
          %939 = vmatpush1.bf16.msra.mxu0 0
          %940 = vmatprep.subr.bf16.mxu0 0
          %941 = vmatpush1.bf16.msra.mxu0 0
          %942 = vmatprep.mubr.bf16.mxu0 0
          %943 = vmatmul.mubr.bf16.gmra.mrb[0].mxu0 %v905
          %v944 = vpop.f32.mrb[0].mxu0
          %v945 = vadd.f32 0.0, %v944
          %v946 = vpop.f32.mrb[0].mxu0
          %v947 = vpop.f32.mrb[0].mxu0
          %v948 = vpop.f32.mrb[0].mxu0
          %949 = vdwg.mxu0
          %v951 = vsel %vm680, %v788, 0
          %v954 = vsel %vm744, %v789, 0
          %956 = vmatprep.subr.bf16.mxu0 0
          %957 = vmatpush1.bf16.msra.mxu0 %v954
          %958 = vmatprep.subr.bf16.mxu0 0
          %959 = vmatpush1.bf16.msra.mxu0 0
          %960 = vmatprep.subr.bf16.mxu0 0
          %961 = vmatpush1.bf16.msra.mxu0 0
          %962 = vmatprep.subr.bf16.mxu0 0
          %963 = vmatpush1.bf16.msra.mxu0 0
          %964 = vmatprep.subr.bf16.mxu0 0
          %965 = vmatpush1.bf16.msra.mxu0 0
          %966 = vmatprep.subr.bf16.mxu0 0
          %967 = vmatpush1.bf16.msra.mxu0 0
          %968 = vmatprep.subr.bf16.mxu0 0
          %969 = vmatpush1.bf16.msra.mxu0 0
          %970 = vmatprep.subr.bf16.mxu0 0
          %971 = vmatpush1.bf16.msra.mxu0 0
          %972 = vmatprep.subr.bf16.mxu0 0
          %973 = vmatpush1.bf16.msra.mxu0 0
          %974 = vmatprep.subr.bf16.mxu0 0
          %975 = vmatpush1.bf16.msra.mxu0 0
          %976 = vmatprep.subr.bf16.mxu0 0
          %977 = vmatpush1.bf16.msra.mxu0 0
          %978 = vmatprep.subr.bf16.mxu0 0
          %979 = vmatpush1.bf16.msra.mxu0 0
          %980 = vmatprep.subr.bf16.mxu0 0
          %981 = vmatpush1.bf16.msra.mxu0 0
          %982 = vmatprep.subr.bf16.mxu0 0
          %983 = vmatpush1.bf16.msra.mxu0 0
          %984 = vmatprep.subr.bf16.mxu0 0
          %985 = vmatpush1.bf16.msra.mxu0 0
          %986 = vmatprep.subr.bf16.mxu0 0
          %987 = vmatpush1.bf16.msra.mxu0 0
          %988 = vmatprep.mubr.bf16.mxu0 0
          %989 = vmatmul.mubr.bf16.gmra.mrb[0].mxu0 %v951
          %v990 = vpop.f32.mrb[0].mxu0
          %v991 = vadd.f32 %v945, %v990
          %v992 = vpop.f32.mrb[0].mxu0
          %v993 = vpop.f32.mrb[0].mxu0
          %v994 = vpop.f32.mrb[0].mxu0
          %995 = vdwg.mxu0
          %996 = vrot.lane.b32.xlu0 %v675, 112
          %v997 = vpop.permute.xlu0 %996
          %998 = vrot.lane.b32.xlu0 %v676, 80
          %v999 = vpop.permute.xlu0 %998
          %v1001 = vsel %vm680, %v997, 0
          %v1004 = vsel %vm680, %v999, 0
          %1006 = vmatprep.subr.bf16.mxu0 0
          %1007 = vmatpush1.bf16.xpose.msra.mxu0 %v1004
          %1008 = vmatprep.subr.bf16.mxu0 0
          %1009 = vmatpush1.bf16.xpose.msra.mxu0 0
          %1010 = vmatprep.subr.bf16.mxu0 0
          %1011 = vmatpush1.bf16.xpose.msra.mxu0 0
          %1012 = vmatprep.subr.bf16.mxu0 0
          %1013 = vmatpush1.bf16.xpose.msra.mxu0 0
          %1014 = vmatprep.subr.bf16.mxu0 0
          %1015 = vmatpush1.bf16.xpose.msra.mxu0 0
          %1016 = vmatprep.subr.bf16.mxu0 0
          %1017 = vmatpush1.bf16.xpose.msra.mxu0 0
          %1018 = vmatprep.subr.bf16.mxu0 0
          %1019 = vmatpush1.bf16.xpose.msra.mxu0 0
          %1020 = vmatprep.subr.bf16.mxu0 0
          %1021 = vmatpush1.bf16.xpose.msra.mxu0 0
          %1022 = vmatprep.subr.bf16.mxu0 0
          %1023 = vmatpush1.bf16.xpose.msra.mxu0 0
          %1024 = vmatprep.subr.bf16.mxu0 0
          %1025 = vmatpush1.bf16.xpose.msra.mxu0 0
          %1026 = vmatprep.subr.bf16.mxu0 0
          %1027 = vmatpush1.bf16.xpose.msra.mxu0 0
          %1028 = vmatprep.subr.bf16.mxu0 0
          %1029 = vmatpush1.bf16.xpose.msra.mxu0 0
          %1030 = vmatprep.subr.bf16.mxu0 0
          %1031 = vmatpush1.bf16.xpose.msra.mxu0 0
          %1032 = vmatprep.subr.bf16.mxu0 0
          %1033 = vmatpush1.bf16.xpose.msra.mxu0 0
          %1034 = vmatprep.subr.bf16.mxu0 0
          %1035 = vmatpush1.bf16.xpose.msra.mxu0 0
          %1036 = vmatprep.subr.bf16.mxu0 0
          %1037 = vmatpush1.bf16.xpose.msra.mxu0 0
          %1038 = vmatprep.mubr.bf16.mxu0 0
          %1039 = vmatmul.mubr.bf16.gmra.mrb[0].mxu0 %v1001
          %v1040 = vpop.f32.mrb[0].mxu0
          %v1041 = vadd.f32 0.0, %v1040
          %v1042 = vpop.f32.mrb[0].mxu0
          %v1043 = vpop.f32.mrb[0].mxu0
          %v1044 = vpop.f32.mrb[0].mxu0
          %1045 = vdwg.mxu0
          %v1046 = vsel %vm680, %v1041, -inf
          %1047 = vmax.xlane.f32.xlu0 %v1046
          %v1048 = vpop.xlane.xlu0 %1047
          %v1049 = vsub.f32 %v1041, %v1048
          %v1050 = vmul.f32 %v1049, 1.442695
          %v1051 = vpow.pop %v1050
          %v1052 = vsel %vm680, %v1051, 0.0
          %1053 = vadd.xlane.f32.xlu0 %v1052
          %v1054 = vpop.xlane.xlu0 %1053
          %v1055 = vrcp.pop %v1054
          %v1056 = vmul.f32 %v1051, %v1055
          %v1057 = vpack.c.bf16 %v1056, %v1056
          %1058 = vrot.lane.b32.xlu0 %v676, 48
          %v1059 = vpop.permute.xlu0 %1058
          %v1061 = vsel %vm680, %v1057, 0
          %v1064 = vsel %vm744, %v1059, 0
          %1066 = vmatprep.subr.bf16.mxu0 0
          %1067 = vmatpush1.bf16.msra.mxu0 %v1064
          %1068 = vmatprep.subr.bf16.mxu0 0
          %1069 = vmatpush1.bf16.msra.mxu0 0
          %1070 = vmatprep.subr.bf16.mxu0 0
          %1071 = vmatpush1.bf16.msra.mxu0 0
          %1072 = vmatprep.subr.bf16.mxu0 0
          %1073 = vmatpush1.bf16.msra.mxu0 0
          %1074 = vmatprep.subr.bf16.mxu0 0
          %1075 = vmatpush1.bf16.msra.mxu0 0
          %1076 = vmatprep.subr.bf16.mxu0 0
          %1077 = vmatpush1.bf16.msra.mxu0 0
          %1078 = vmatprep.subr.bf16.mxu0 0
          %1079 = vmatpush1.bf16.msra.mxu0 0
          %1080 = vmatprep.subr.bf16.mxu0 0
          %1081 = vmatpush1.bf16.msra.mxu0 0
          %1082 = vmatprep.subr.bf16.mxu0 0
          %1083 = vmatpush1.bf16.msra.mxu0 0
          %1084 = vmatprep.subr.bf16.mxu0 0
          %1085 = vmatpush1.bf16.msra.mxu0 0
          %1086 = vmatprep.subr.bf16.mxu0 0
          %1087 = vmatpush1.bf16.msra.mxu0 0
          %1088 = vmatprep.subr.bf16.mxu0 0
          %1089 = vmatpush1.bf16.msra.mxu0 0
          %1090 = vmatprep.subr.bf16.mxu0 0
          %1091 = vmatpush1.bf16.msra.mxu0 0
          %1092 = vmatprep.subr.bf16.mxu0 0
          %1093 = vmatpush1.bf16.msra.mxu0 0
          %1094 = vmatprep.subr.bf16.mxu0 0
          %1095 = vmatpush1.bf16.msra.mxu0 0
          %1096 = vmatprep.subr.bf16.mxu0 0
          %1097 = vmatpush1.bf16.msra.mxu0 0
          %1098 = vmatprep.mubr.bf16.mxu0 0
          %1099 = vmatmul.mubr.bf16.gmra.mrb[0].mxu0 %v1061
          %v1100 = vpop.f32.mrb[0].mxu0
          %v1101 = vadd.f32 0.0, %v1100
          %v1102 = vpop.f32.mrb[0].mxu0
          %v1103 = vpop.f32.mrb[0].mxu0
          %v1104 = vpop.f32.mrb[0].mxu0
          %1105 = vdwg.mxu0
          %v1106 = vpack.c.bf16 %v1101, %v1101
          %s1107 = scalar_lea.vmem %s5, 8
          %v1108 = vld [vmem:[%s1107] sm:$0xf]
          %v1110 = vsel %vm680, %v1106, 0
          %v1113 = vsel %vm744, %v1108, 0
          %1115 = vmatprep.subr.bf16.mxu0 0
          %1116 = vmatpush1.bf16.msra.mxu0 %v1113
          %1117 = vmatprep.subr.bf16.mxu0 0
          %1118 = vmatpush1.bf16.msra.mxu0 0
          %1119 = vmatprep.subr.bf16.mxu0 0
          %1120 = vmatpush1.bf16.msra.mxu0 0
          %1121 = vmatprep.subr.bf16.mxu0 0
          %1122 = vmatpush1.bf16.msra.mxu0 0
          %1123 = vmatprep.subr.bf16.mxu0 0
          %1124 = vmatpush1.bf16.msra.mxu0 0
          %1125 = vmatprep.subr.bf16.mxu0 0
          %1126 = vmatpush1.bf16.msra.mxu0 0
          %1127 = vmatprep.subr.bf16.mxu0 0
          %1128 = vmatpush1.bf16.msra.mxu0 0
          %1129 = vmatprep.subr.bf16.mxu0 0
          %1130 = vmatpush1.bf16.msra.mxu0 0
          %1131 = vmatprep.subr.bf16.mxu0 0
          %1132 = vmatpush1.bf16.msra.mxu0 0
          %1133 = vmatprep.subr.bf16.mxu0 0
          %1134 = vmatpush1.bf16.msra.mxu0 0
          %1135 = vmatprep.subr.bf16.mxu0 0
          %1136 = vmatpush1.bf16.msra.mxu0 0
          %1137 = vmatprep.subr.bf16.mxu0 0
          %1138 = vmatpush1.bf16.msra.mxu0 0
          %1139 = vmatprep.subr.bf16.mxu0 0
          %1140 = vmatpush1.bf16.msra.mxu0 0
          %1141 = vmatprep.subr.bf16.mxu0 0
          %1142 = vmatpush1.bf16.msra.mxu0 0
          %1143 = vmatprep.subr.bf16.mxu0 0
          %1144 = vmatpush1.bf16.msra.mxu0 0
          %1145 = vmatprep.subr.bf16.mxu0 0
          %1146 = vmatpush1.bf16.msra.mxu0 0
          %1147 = vmatprep.mubr.bf16.mxu0 0
          %1148 = vmatmul.mubr.bf16.gmra.mrb[0].mxu0 %v1110
          %v1149 = vpop.f32.mrb[0].mxu0
          %v1150 = vadd.f32 0.0, %v1149
          %v1151 = vpop.f32.mrb[0].mxu0
          %v1152 = vpop.f32.mrb[0].mxu0
          %v1153 = vpop.f32.mrb[0].mxu0
          %1154 = vdwg.mxu0
          %v1155 = vadd.f32 %v991, %v1150
          %1156 = vrot.lane.b32.xlu0 %v675, 104
          %v1157 = vpop.permute.xlu0 %1156
          %1158 = vrot.lane.b32.xlu0 %v676, 72
          %v1159 = vpop.permute.xlu0 %1158
          %v1161 = vsel %vm680, %v1157, 0
          %v1164 = vsel %vm680, %v1159, 0
          %1166 = vmatprep.subr.bf16.mxu0 0
          %1167 = vmatpush1.bf16.xpose.msra.mxu0 %v1164
          %1168 = vmatprep.subr.bf16.mxu0 0
          %1169 = vmatpush1.bf16.xpose.msra.mxu0 0
          %1170 = vmatprep.subr.bf16.mxu0 0
          %1171 = vmatpush1.bf16.xpose.msra.mxu0 0
          %1172 = vmatprep.subr.bf16.mxu0 0
          %1173 = vmatpush1.bf16.xpose.msra.mxu0 0
          %1174 = vmatprep.subr.bf16.mxu0 0
          %1175 = vmatpush1.bf16.xpose.msra.mxu0 0
          %1176 = vmatprep.subr.bf16.mxu0 0
          %1177 = vmatpush1.bf16.xpose.msra.mxu0 0
          %1178 = vmatprep.subr.bf16.mxu0 0
          %1179 = vmatpush1.bf16.xpose.msra.mxu0 0
          %1180 = vmatprep.subr.bf16.mxu0 0
          %1181 = vmatpush1.bf16.xpose.msra.mxu0 0
          %1182 = vmatprep.subr.bf16.mxu0 0
          %1183 = vmatpush1.bf16.xpose.msra.mxu0 0
          %1184 = vmatprep.subr.bf16.mxu0 0
          %1185 = vmatpush1.bf16.xpose.msra.mxu0 0
          %1186 = vmatprep.subr.bf16.mxu0 0
          %1187 = vmatpush1.bf16.xpose.msra.mxu0 0
          %1188 = vmatprep.subr.bf16.mxu0 0
          %1189 = vmatpush1.bf16.xpose.msra.mxu0 0
          %1190 = vmatprep.subr.bf16.mxu0 0
          %1191 = vmatpush1.bf16.xpose.msra.mxu0 0
          %1192 = vmatprep.subr.bf16.mxu0 0
          %1193 = vmatpush1.bf16.xpose.msra.mxu0 0
          %1194 = vmatprep.subr.bf16.mxu0 0
          %1195 = vmatpush1.bf16.xpose.msra.mxu0 0
          %1196 = vmatprep.subr.bf16.mxu0 0
          %1197 = vmatpush1.bf16.xpose.msra.mxu0 0
          %1198 = vmatprep.mubr.bf16.mxu0 0
          %1199 = vmatmul.mubr.bf16.gmra.mrb[0].mxu0 %v1161
          %v1200 = vpop.f32.mrb[0].mxu0
          %v1201 = vadd.f32 0.0, %v1200
          %v1202 = vpop.f32.mrb[0].mxu0
          %v1203 = vpop.f32.mrb[0].mxu0
          %v1204 = vpop.f32.mrb[0].mxu0
          %1205 = vdwg.mxu0
          %v1206 = vsel %vm680, %v1201, -inf
          %1207 = vmax.xlane.f32.xlu0 %v1206
          %v1208 = vpop.xlane.xlu0 %1207
          %v1209 = vsub.f32 %v1201, %v1208
          %v1210 = vmul.f32 %v1209, 1.442695
          %v1211 = vpow.pop %v1210
          %v1212 = vsel %vm680, %v1211, 0.0
          %1213 = vadd.xlane.f32.xlu0 %v1212
          %v1214 = vpop.xlane.xlu0 %1213
          %v1215 = vrcp.pop %v1214
          %v1216 = vmul.f32 %v1211, %v1215
          %v1217 = vpack.c.bf16 %v1216, %v1216
          %1218 = vrot.lane.b32.xlu0 %v676, 40
          %v1219 = vpop.permute.xlu0 %1218
          %v1221 = vsel %vm680, %v1217, 0
          %v1224 = vsel %vm744, %v1219, 0
          %1226 = vmatprep.subr.bf16.mxu0 0
          %1227 = vmatpush1.bf16.msra.mxu0 %v1224
          %1228 = vmatprep.subr.bf16.mxu0 0
          %1229 = vmatpush1.bf16.msra.mxu0 0
          %1230 = vmatprep.subr.bf16.mxu0 0
          %1231 = vmatpush1.bf16.msra.mxu0 0
          %1232 = vmatprep.subr.bf16.mxu0 0
          %1233 = vmatpush1.bf16.msra.mxu0 0
          %1234 = vmatprep.subr.bf16.mxu0 0
          %1235 = vmatpush1.bf16.msra.mxu0 0
          %1236 = vmatprep.subr.bf16.mxu0 0
          %1237 = vmatpush1.bf16.msra.mxu0 0
          %1238 = vmatprep.subr.bf16.mxu0 0
          %1239 = vmatpush1.bf16.msra.mxu0 0
          %1240 = vmatprep.subr.bf16.mxu0 0
          %1241 = vmatpush1.bf16.msra.mxu0 0
          %1242 = vmatprep.subr.bf16.mxu0 0
          %1243 = vmatpush1.bf16.msra.mxu0 0
          %1244 = vmatprep.subr.bf16.mxu0 0
          %1245 = vmatpush1.bf16.msra.mxu0 0
          %1246 = vmatprep.subr.bf16.mxu0 0
          %1247 = vmatpush1.bf16.msra.mxu0 0
          %1248 = vmatprep.subr.bf16.mxu0 0
          %1249 = vmatpush1.bf16.msra.mxu0 0
          %1250 = vmatprep.subr.bf16.mxu0 0
          %1251 = vmatpush1.bf16.msra.mxu0 0
          %1252 = vmatprep.subr.bf16.mxu0 0
          %1253 = vmatpush1.bf16.msra.mxu0 0
          %1254 = vmatprep.subr.bf16.mxu0 0
          %1255 = vmatpush1.bf16.msra.mxu0 0
          %1256 = vmatprep.subr.bf16.mxu0 0
          %1257 = vmatpush1.bf16.msra.mxu0 0
          %1258 = vmatprep.mubr.bf16.mxu0 0
          %1259 = vmatmul.mubr.bf16.gmra.mrb[0].mxu0 %v1221
          %v1260 = vpop.f32.mrb[0].mxu0
          %v1261 = vadd.f32 0.0, %v1260
          %v1262 = vpop.f32.mrb[0].mxu0
          %v1263 = vpop.f32.mrb[0].mxu0
          %v1264 = vpop.f32.mrb[0].mxu0
          %1265 = vdwg.mxu0
          %v1266 = vpack.c.bf16 %v1261, %v1261
          %s1267 = scalar_lea.vmem %s5, 12
          %v1268 = vld [vmem:[%s1267] sm:$0xf]
          %v1270 = vsel %vm680, %v1266, 0
          %v1273 = vsel %vm744, %v1268, 0
          %1275 = vmatprep.subr.bf16.mxu0 0
          %1276 = vmatpush1.bf16.msra.mxu0 %v1273
          %1277 = vmatprep.subr.bf16.mxu0 0
          %1278 = vmatpush1.bf16.msra.mxu0 0
          %1279 = vmatprep.subr.bf16.mxu0 0
          %1280 = vmatpush1.bf16.msra.mxu0 0
          %1281 = vmatprep.subr.bf16.mxu0 0
          %1282 = vmatpush1.bf16.msra.mxu0 0
          %1283 = vmatprep.subr.bf16.mxu0 0
          %1284 = vmatpush1.bf16.msra.mxu0 0
          %1285 = vmatprep.subr.bf16.mxu0 0
          %1286 = vmatpush1.bf16.msra.mxu0 0
          %1287 = vmatprep.subr.bf16.mxu0 0
          %1288 = vmatpush1.bf16.msra.mxu0 0
          %1289 = vmatprep.subr.bf16.mxu0 0
          %1290 = vmatpush1.bf16.msra.mxu0 0
          %1291 = vmatprep.subr.bf16.mxu0 0
          %1292 = vmatpush1.bf16.msra.mxu0 0
          %1293 = vmatprep.subr.bf16.mxu0 0
          %1294 = vmatpush1.bf16.msra.mxu0 0
          %1295 = vmatprep.subr.bf16.mxu0 0
          %1296 = vmatpush1.bf16.msra.mxu0 0
          %1297 = vmatprep.subr.bf16.mxu0 0
          %1298 = vmatpush1.bf16.msra.mxu0 0
          %1299 = vmatprep.subr.bf16.mxu0 0
          %1300 = vmatpush1.bf16.msra.mxu0 0
          %1301 = vmatprep.subr.bf16.mxu0 0
          %1302 = vmatpush1.bf16.msra.mxu0 0
          %1303 = vmatprep.subr.bf16.mxu0 0
          %1304 = vmatpush1.bf16.msra.mxu0 0
          %1305 = vmatprep.subr.bf16.mxu0 0
          %1306 = vmatpush1.bf16.msra.mxu0 0
          %1307 = vmatprep.mubr.bf16.mxu0 0
          %1308 = vmatmul.mubr.bf16.gmra.mrb[0].mxu0 %v1270
          %v1309 = vpop.f32.mrb[0].mxu0
          %v1310 = vadd.f32 0.0, %v1309
          %v1311 = vpop.f32.mrb[0].mxu0
          %v1312 = vpop.f32.mrb[0].mxu0
          %v1313 = vpop.f32.mrb[0].mxu0
          %1314 = vdwg.mxu0
          %v1315 = vadd.f32 %v1155, %v1310
          %v1316 = vld [vmem:[%s6] sm:$0x1]
          %v1318 = vlaneseq
          %v1319 = vshrl.u32 %v1318, 7
          %v1320 = vsub.s32 0, %v1319
          %v1321 = vrot.slane %v1316, %v1320
          %v1323 = vadd.f32 %v1315, %v1321
          %v1324 = vadd.f32 %v1323, %v575
          %v1325 = vld [vmem:[%s7] sm:$0x1]
          %v1326 = vld [vmem:[%s8] sm:$0x1]
          %v1327 = vsel %vm578, %v1324, 0.0
          %1328 = vadd.xlane.f32.xlu0 %v1327
          %v1329 = vpop.xlane.xlu0 %1328
          %v1330 = vmul.f32 %v1329, %v582
          %v1331 = vsub.f32 %v1324, %v1330
          %v1332 = vmul.f32 %v1331, %v1331
          %v1333 = vsel %vm578, %v1332, 0.0
          %1334 = vadd.xlane.f32.xlu0 %v1333
          %v1335 = vpop.xlane.xlu0 %1334
          %v1336 = vmul.f32 %v1335, %v582
          %v1337 = vadd.f32 %v1336, 1e-05
          %v1338 = vrsqrt.pop %v1337
          %v1339 = vmul.f32 %v1331, %v1338
          %v1341 = vlaneseq
          %v1342 = vshrl.u32 %v1341, 7
          %v1343 = vsub.s32 0, %v1342
          %v1344 = vrot.slane %v1325, %v1343
          %v1346 = vmul.f32 %v1339, %v1344
          %v1348 = vlaneseq
          %v1349 = vshrl.u32 %v1348, 7
          %v1350 = vsub.s32 0, %v1349
          %v1351 = vrot.slane %v1326, %v1350
          %v1353 = vadd.f32 %v1346, %v1351
          %v1354 = vpack.c.bf16 %v1353, %v1353
          %v1355 = vld [vmem:[%s9] sm:$0xf]
          %v1356 = vld [vmem:[%s9 + $0x4] sm:$0xf]
          %v1357 = vld [vmem:[%s9 + $0x8] sm:$0xf]
          %v1358 = vld [vmem:[%s9 + $0xc] sm:$0xf]
          %v1359 = vld [vmem:[%s10] sm:$0x1]
          %v1361 = vlaneseq
          %v1362 = vshrl.u32 %v1361, 7
          %v1363 = vsub.s32 0, %v1362
          %v1364 = vrot.slane %v1359, %v1363
          %v1370 = vunpack.c.l.b16 %v1355
          %v1371 = vunpack.c.l.b16 %v1356
          %v1372 = vunpack.c.l.b16 %v1357
          %v1373 = vunpack.c.l.b16 %v1358
          %v1374 = vpack.c.b16 %v1371, %v1370
          %v1375 = vpack.c.b16 %v1373, %v1372
          %v1379 = vsel %vm578, %v1354, 0
          %1381 = vmatprep.subr.bf16.mxu0 0
          %1382 = vmatpush1.bf16.msra.mxu0 %v1374
          %1383 = vmatprep.subr.bf16.mxu0 0
          %1384 = vmatpush1.bf16.msra.mxu0 %v1375
          %1385 = vmatprep.subr.bf16.mxu0 0
          %1386 = vmatpush1.bf16.msra.mxu0 0
          %1387 = vmatprep.subr.bf16.mxu0 0
          %1388 = vmatpush1.bf16.msra.mxu0 0
          %1389 = vmatprep.subr.bf16.mxu0 0
          %1390 = vmatpush1.bf16.msra.mxu0 0
          %1391 = vmatprep.subr.bf16.mxu0 0
          %1392 = vmatpush1.bf16.msra.mxu0 0
          %1393 = vmatprep.subr.bf16.mxu0 0
          %1394 = vmatpush1.bf16.msra.mxu0 0
          %1395 = vmatprep.subr.bf16.mxu0 0
          %1396 = vmatpush1.bf16.msra.mxu0 0
          %1397 = vmatprep.subr.bf16.mxu0 0
          %1398 = vmatpush1.bf16.msra.mxu0 0
          %1399 = vmatprep.subr.bf16.mxu0 0
          %1400 = vmatpush1.bf16.msra.mxu0 0
          %1401 = vmatprep.subr.bf16.mxu0 0
          %1402 = vmatpush1.bf16.msra.mxu0 0
          %1403 = vmatprep.subr.bf16.mxu0 0
          %1404 = vmatpush1.bf16.msra.mxu0 0
          %1405 = vmatprep.subr.bf16.mxu0 0
          %1406 = vmatpush1.bf16.msra.mxu0 0
          %1407 = vmatprep.subr.bf16.mxu0 0
          %1408 = vmatpush1.bf16.msra.mxu0 0
          %1409 = vmatprep.subr.bf16.mxu0 0
          %1410 = vmatpush1.bf16.msra.mxu0 0
          %1411 = vmatprep.subr.bf16.mxu0 0
          %1412 = vmatpush1.bf16.msra.mxu0 0
          %1413 = vmatprep.mubr.bf16.mxu0 0
          %1414 = vmatmul.mubr.bf16.gmra.mrb[0].mxu0 %v1379
          %v1415 = vpop.f32.mrb[0].mxu0
          %v1416 = vadd.f32 %v1364, %v1415
          %v1417 = vpop.f32.mrb[0].mxu0
          %v1418 = vpop.f32.mrb[0].mxu0
          %v1419 = vpop.f32.mrb[0].mxu0
          %1420 = vdwg.mxu0
          %vm1421 = vcmask 31744
          %v1422 = vsel %vm1421, %v1416, -inf
          %1423 = vmax.xlane.f32.xlu0 %v1422
          %v1424 = vpop.xlane.xlu0 %1423
          %v1425 = vsub.f32 %v1416, %v1424
          %v1426 = vmul.f32 %v1425, 1.442695
          %v1427 = vpow.pop %v1426
          %v1428 = vsel %vm1421, %v1427, 0.0
          %1429 = vadd.xlane.f32.xlu0 %v1428
          %v1430 = vpop.xlane.xlu0 %1429
          %v1431 = vrcp.pop %v1430
          %v1432 = vmul.f32 %v1427, %v1431
          %vm1433 = vcmp.eq.f32.partialorder %v1416, %v1424
          %v1434 = vsel %vm1433, -inf, %v1416
          %v1435 = vsel %vm1421, %v1434, -inf
          %1436 = vmax.xlane.f32.xlu0 %v1435
          %v1437 = vpop.xlane.xlu0 %1436
          %vm1438 = vcmp.eq.f32.partialorder %v1434, %v1437
          %vm1439 = vmor %vm1433, %vm1438
          %v1440 = vsel %vm1439, %v1432, 0.0
          %v1441 = vsel %vm1421, %v1440, 0.0
          %1442 = vadd.xlane.f32.xlu0 %v1441
          %v1443 = vpop.xlane.xlu0 %1442
          %v1444 = vrcp.pop %v1443
          %v1445 = vmul.f32 %v1440, %v1444
          %1446 = vst.msk [vmem:[#allocation2] sm:$0xff] %vm578, %v1324
          %vm1447 = vcmask 257024
          %1448 = vst.msk [vmem:[#allocation3] sm:$0xf] %vm1447, %v1354
          %1449 = vst.msk [vmem:[#allocation4] sm:$0xff] %vm1421, %v1445
        $region84: #{tpu_custom_call.1} parent=79 // pred_fallthru
          _
        %v1450 = vld [vmem:[#allocation3] sm:$0xf]
        %v1451 = vld [vmem:[%s558] sm:$0xf]
        %v1452 = vld [vmem:[%s558 + $0x4] sm:$0xf]
        %v1453 = vld [vmem:[%s558 + $0x8] sm:$0xf]
        %v1454 = vld [vmem:[%s558 + $0xc] sm:$0xf]
        %v1455 = vld [vmem:[%s561] sm:$0x1]
        %v1457 = vlaneseq
        %v1458 = vshrl.u32 %v1457, 7
        %v1459 = vsub.s32 0, %v1458
        %v1460 = vrot.slane %v1455, %v1459
        %v1466 = vunpack.c.l.b16 %v1451
        %v1467 = vunpack.c.l.b16 %v1452
        %v1468 = vunpack.c.l.b16 %v1453
        %v1469 = vunpack.c.l.b16 %v1454
        %v1470 = vpack.c.b16 %v1467, %v1466
        %v1471 = vpack.c.b16 %v1469, %v1468
        %vm1474 = vcmask 261120
        %v1476 = vsel %vm1474, %v1450, 0
        %1478 = vmatprep.subr.bf16.mxu0 0
        %1479 = vmatpush1.bf16.msra.mxu0 %v1470
        %1480 = vmatprep.subr.bf16.mxu0 0
        %1481 = vmatpush1.bf16.msra.mxu0 %v1471
        %1482 = vmatprep.subr.bf16.mxu0 0
        %1483 = vmatpush1.bf16.msra.mxu0 0
        %1484 = vmatprep.subr.bf16.mxu0 0
        %1485 = vmatpush1.bf16.msra.mxu0 0
        %1486 = vmatprep.subr.bf16.mxu0 0
        %1487 = vmatpush1.bf16.msra.mxu0 0
        %1488 = vmatprep.subr.bf16.mxu0 0
        %1489 = vmatpush1.bf16.msra.mxu0 0
        %1490 = vmatprep.subr.bf16.mxu0 0
        %1491 = vmatpush1.bf16.msra.mxu0 0
        %1492 = vmatprep.subr.bf16.mxu0 0
        %1493 = vmatpush1.bf16.msra.mxu0 0
        %1494 = vmatprep.subr.bf16.mxu0 0
        %1495 = vmatpush1.bf16.msra.mxu0 0
        %1496 = vmatprep.subr.bf16.mxu0 0
        %1497 = vmatpush1.bf16.msra.mxu0 0
        %1498 = vmatprep.subr.bf16.mxu0 0
        %1499 = vmatpush1.bf16.msra.mxu0 0
        %1500 = vmatprep.subr.bf16.mxu0 0
        %1501 = vmatpush1.bf16.msra.mxu0 0
        %1502 = vmatprep.subr.bf16.mxu0 0
        %1503 = vmatpush1.bf16.msra.mxu0 0
        %1504 = vmatprep.subr.bf16.mxu0 0
        %1505 = vmatpush1.bf16.msra.mxu0 0
        %1506 = vmatprep.subr.bf16.mxu0 0
        %1507 = vmatpush1.bf16.msra.mxu0 0
        %1508 = vmatprep.subr.bf16.mxu0 0
        %1509 = vmatpush1.bf16.msra.mxu0 0
        %1510 = vmatprep.mubr.bf16.mxu0 0
        %1511 = vmatmul.mubr.bf16.gmra.mrb[0].mxu0 %v1476
        %v1512 = vpop.f32.mrb[0].mxu0
        %v1513 = vadd.f32 %v1460, %v1512
        %v1514 = vpop.f32.mrb[0].mxu0
        %v1515 = vpop.f32.mrb[0].mxu0
        %v1516 = vpop.f32.mrb[0].mxu0
        %1517 = vdwg.mxu0
        %v1518 = vmax.f32 %v1513, 0.0
        %v1519 = vpack.c.bf16 %v1518, %v1518
        %v1520 = vld [vmem:[%s566] sm:$0xf]
        %v1521 = vld [vmem:[%s566 + $0x4] sm:$0xf]
        %v1522 = vld [vmem:[%s566 + $0x8] sm:$0xf]
        %v1523 = vld [vmem:[%s566 + $0xc] sm:$0xf]
        %v1524 = vld [vmem:[%s566 + $0x10] sm:$0xf]
        %v1525 = vld [vmem:[%s566 + $0x14] sm:$0xf]
        %v1526 = vld [vmem:[%s566 + $0x18] sm:$0xf]
        %v1527 = vld [vmem:[%s566 + $0x1c] sm:$0xf]
        %v1528 = vld [vmem:[%s569] sm:$0x1]
        %v1530 = vlaneseq
        %v1531 = vshrl.u32 %v1530, 7
        %v1532 = vsub.s32 0, %v1531
        %v1533 = vrot.slane %v1528, %v1532
        %v1543 = vunpack.c.l.b16 %v1520
        %v1544 = vunpack.c.l.b16 %v1521
        %v1545 = vunpack.c.l.b16 %v1522
        %v1546 = vunpack.c.l.b16 %v1523
        %v1547 = vunpack.c.l.b16 %v1524
        %v1548 = vunpack.c.l.b16 %v1525
        %v1549 = vunpack.c.l.b16 %v1526
        %v1550 = vunpack.c.l.b16 %v1527
        %v1551 = vpack.c.b16 %v1544, %v1543
        %v1552 = vpack.c.b16 %v1546, %v1545
        %v1553 = vpack.c.b16 %v1548, %v1547
        %v1554 = vpack.c.b16 %v1550, %v1549
        %vm1559 = vcmask 523264
        %v1561 = vsel %vm1559, %v1519, 0
        %1563 = vmatprep.subr.bf16.mxu0 0
        %1564 = vmatpush1.bf16.msra.mxu0 %v1551
        %1565 = vmatprep.subr.bf16.mxu0 0
        %1566 = vmatpush1.bf16.msra.mxu0 %v1552
        %1567 = vmatprep.subr.bf16.mxu0 0
        %1568 = vmatpush1.bf16.msra.mxu0 %v1553
        %1569 = vmatprep.subr.bf16.mxu0 0
        %1570 = vmatpush1.bf16.msra.mxu0 %v1554
        %1571 = vmatprep.subr.bf16.mxu0 0
        %1572 = vmatpush1.bf16.msra.mxu0 0
        %1573 = vmatprep.subr.bf16.mxu0 0
        %1574 = vmatpush1.bf16.msra.mxu0 0
        %1575 = vmatprep.subr.bf16.mxu0 0
        %1576 = vmatpush1.bf16.msra.mxu0 0
        %1577 = vmatprep.subr.bf16.mxu0 0
        %1578 = vmatpush1.bf16.msra.mxu0 0
        %1579 = vmatprep.subr.bf16.mxu0 0
        %1580 = vmatpush1.bf16.msra.mxu0 0
        %1581 = vmatprep.subr.bf16.mxu0 0
        %1582 = vmatpush1.bf16.msra.mxu0 0
        %1583 = vmatprep.subr.bf16.mxu0 0
        %1584 = vmatpush1.bf16.msra.mxu0 0
        %1585 = vmatprep.subr.bf16.mxu0 0
        %1586 = vmatpush1.bf16.msra.mxu0 0
        %1587 = vmatprep.subr.bf16.mxu0 0
        %1588 = vmatpush1.bf16.msra.mxu0 0
        %1589 = vmatprep.subr.bf16.mxu0 0
        %1590 = vmatpush1.bf16.msra.mxu0 0
        %1591 = vmatprep.subr.bf16.mxu0 0
        %1592 = vmatpush1.bf16.msra.mxu0 0
        %1593 = vmatprep.subr.bf16.mxu0 0
        %1594 = vmatpush1.bf16.msra.mxu0 0
        %1595 = vmatprep.mubr.bf16.mxu0 0
        %1596 = vmatmul.mubr.bf16.gmra.mrb[0].mxu0 %v1561
        %v1597 = vpop.f32.mrb[0].mxu0
        %v1598 = vadd.f32 %v1533, %v1597
        %v1599 = vpop.f32.mrb[0].mxu0
        %v1600 = vpop.f32.mrb[0].mxu0
        %v1601 = vpop.f32.mrb[0].mxu0
        %1602 = vdwg.mxu0
        %v1603 = vlaneseq
        %v1604 = vand.u32 %v1603, 127
        %v1605 = vstv %s34
        %vm1606 = vcmp.eq.s32.totalorder %v1604, %v1605
        %v1607 = vsel %vm1606, 1, 0
        %v1608 = vcvt.s32.f32 %v1607
        %v1609 = vld [vmem:[#allocation4] sm:$0xff]
        %v1610 = vmul.f32 %v1609, %v1608
        %vm1611 = vcmask 31744
        %v1612 = vsel %vm1611, %v1610, 0.0
        %1613 = vadd.xlane.f32.xlu0 %v1612
        %v1614 = vpop.xlane.xlu0 %1613
        %v1615 = vld [vmem:[#allocation2] sm:$0xff]
        %v1616 = vmul.f32 %v1614, %v1598
        %v1617 = vadd.f32 %v1615, %v1616
        %1618 = vst.msk [vmem:[#allocation2] sm:$0xff] %vm1474, %v1617
        %p1619 = scmp.eq.s32.totalorder %s34, 3
        // Predicated region
        $region85: #{tpu_custom_call.1} parent=79 // pred_check
          %p1620 = pneg %p1619
        $region86: #{tpu_custom_call.1} parent=79 // pred_check_branch
          %1622 = sbr.rel (%p1620) target = $region88
        $region87: #{tpu_custom_call.1} parent=79 // pred_region
          %v1623 = vld [vmem:[#allocation2] sm:$0xff]
          %1624 = vst.msk [vmem:[%s549] sm:$0xff] %vm1474, %v1623
        $region88: #{tpu_custom_call.1} parent=79 // pred_fallthru
          _
        %s1625 = sand.u32 %s389, 1
        %s1626 = scalar_lea.sflag [#allocation6], %s1625
        %s1627 = sand.u32 %s389, 1
        %s1628 = smul.addr %s1627, 8
        %s1629 = scalar_lea.vmem [#allocation5], %s1628
        // Predicated region
        $region89: #{tpu_custom_call.1} parent=79 // pred_check
          %p1630 = pneg %p399
        $region90: #{tpu_custom_call.1} parent=79 // pred_check_branch
          %1632 = sbr.rel (%p1630) target = $region92
        $region91: #{tpu_custom_call.1} parent=79 // pred_region
          %s1634 = ssub.s32 128, 128
          %1635 = vsyncadd %s1626, %s1634
          %s1636 = smul.addr %s33, 128
          %s1637 = scalar_lea.hbm %s15, %s1636
          %s1639 = sshll.u32 %s1629, 4
          %s1640 = int_to_ptr.vmem [resolvable:$true] %s1639
          %1642 = dma.vmem_to_hbm [thread:$0]  %s1640, 128, %s1637, %s1626
        $region92: #{tpu_custom_call.1} parent=79 // pred_fallthru
          _
      $region80: #{tpu_custom_call.1} parent=5 // pred_fallthru
        _
      %p1643 = scmp.le.s32.totalorder 2, %s24
      // Predicated region
      $region93: #{tpu_custom_call.1} parent=5 // pred_check
        %p1644 = pneg %p1643
      $region94: #{tpu_custom_call.1} parent=5 // pred_check_branch
        %1646 = sbr.rel (%p1644) target = $region96
      $region95: #{tpu_custom_call.1} parent=5 // pred_region
        %s1647 = ssub.s32 %s24, 2
        // Predicated region
        $region97: #{tpu_custom_call.1} parent=95 // pred_check
          %p1648 = pneg %p405
        $region98: #{tpu_custom_call.1} parent=95 // pred_check_branch
          %1650 = sbr.rel (%p1648) target = $region100
        $region99: #{tpu_custom_call.1} parent=95 // pred_region
          %s1651 = sand.u32 %s390, 1
          %s1652 = scalar_lea.sflag [#allocation6], %s1651
          %s1653 = sand.u32 %s390, 1
          %s1654 = smul.addr %s1653, 8
          %s1655 = scalar_lea.vmem [#allocation5], %s1654
          %1656 = dma.done %s1652, 128
        $region100: #{tpu_custom_call.1} parent=95 // pred_fallthru
          _
      $region96: #{tpu_custom_call.1} parent=5 // pred_fallthru
        _
    $region6: #{tpu_custom_call.1} parent=1 // loop_footer
      %s28 = sadd.s32 1, %s24
    $region7: #{tpu_custom_call.1} parent=1 // loop_footer_branch
      %23 = sbr.rel target = $region3
    $region8: #{tpu_custom_call.1} parent=1 // loop_exit
      _
    %1657 = vsyncpa [#allocation6], 1
    %s1658 = scalar_lea.sflag [#allocation6], 1
    %1659 = vsyncpa %s1658, 1

</llo_original>
